<compile_context>
chip_gen: v7x
topology: tpu7x:2x2x1
jax: 0.10.0
libtpu: 0.0.40
codegen_flags: <defaults>
</compile_context>

<pallas_src>
import math

import jax
import jax.numpy as jnp
from jax import lax
from jax.experimental import pallas as pl
from jax.experimental.pallas import tpu as pltpu

EPS = 1e-5


def _apply_act(z, activation):
    if activation == 'relu':
        return jnp.maximum(z, 0.0)
    if activation == 'identity':
        return z
    # TODO(synk): elu/selu/gelu/mish/swish/hardswish are simple EUP additions but
    # are not exercised by this block's default configuration.
    raise ValueError(f'unsupported activation: {activation}')


def _equivalent_weight(w, gamma):
    """BroadcastDepthwiseConv2d._compute_equivalent_weight, weights as (C,k,k)."""
    return w + jnp.sum(w * gamma[:, None, None], axis=0, keepdims=True)


def _round_up(x, m):
    return ((x + m - 1) // m) * m


def _pick_strip_rows(h):
    """Output rows per grid step: 4-8 keeps slab+acc within the 64-vreg file."""
    for cand in (4, 8, 2, 1):
        if h % cand == 0:
            return cand
    return h


def _make_kernel(K, H, W, C, TH, WS, pad, activation):
    """One grid step = one TH-row output strip of one image."""

    def kernel(x_ref, mask_ref, w_ref, b1_ref, b2_ref, o_ref, xpad_ref):
        s = pl.program_id(1)

        # ---- once per image: build the zero-haloed copy in VMEM scratch ------
        # Data at rows [pad, pad+H), cols [0, W); rows [0,pad) / [pad+H, pad+H+pad)
        # and cols [W, WS) are zero.  Only the halo is written explicitly; the
        # interior is copied in TH-row chunks to keep register pressure low.
        @pl.when(s == 0)
        def _fill():
            zrows = jnp.zeros((pad, WS, C), jnp.float32)
            xpad_ref[pl.ds(0, pad)] = zrows
            xpad_ref[pl.ds(pad + H, pad)] = zrows
            xpad_ref[pl.ds(pad, H), pl.ds(W, WS - W), :] = jnp.zeros(
                (H, WS - W, C), jnp.float32)
            for r in range(0, H, TH):
                xpad_ref[pl.ds(pad + r, TH), pl.ds(0, W), :] = (
                    x_ref[0, pl.ds(r, TH), :, :])

        # ---- depthwise KxK conv on one strip ---------------------------------
        # Slab rows are padded-H coordinates [s*TH, s*TH + TH + 2*pad); H is a
        # leading (non-tiled) dim so the dynamic offset is cheap and aligned.
        row0 = pl.multiple_of(s * TH, TH)
        slab = xpad_ref[pl.ds(row0, TH + 2 * pad)]           # (TH+2p, WS, C)

        acc = jnp.zeros((TH, W, C), jnp.float32)
        for dx in range(K):
            # Output column j needs input column j + dx - pad.  Rolling by
            # (pad - dx) wraps out-of-range columns into the zero region
            # [W, WS), implementing the 'same' zero padding in W with XLU work.
            shift = (pad - dx) % WS
            rolled = slab if shift == 0 else pltpu.roll(slab, shift=shift, axis=1)
            for dy in range(K):
                acc = acc + rolled[dy:dy + TH, :W, :] * w_ref[dy * K + dx, :]

        # ---- (conv + bias)*mask -> BN(scale folded) -> *mask -> activation ---
        m = jnp.broadcast_to(mask_ref[0], (TH, W, C))        # lane-dense, built once
        z = ((acc + b1_ref[0]) * m + b2_ref[0]) * m
        o_ref[0] = _apply_act(z, activation)

    return kernel


def depthwise_conv_block_pallas(x, mask, params, *, activation='relu'):
    """DepthwiseConvBlock.forward(x, mask) in NHWC, eval-mode BatchNorm."""
    n, h, w, c = x.shape
    k = params['conv_w'].shape[-1]
    pad = k // 2
    ps = (k - 3) // 2

    # ---- parameter folding (plain-JAX glue; mirrors the module's export path) ----
    w_conv = _equivalent_weight(params['conv_w'], params['conv_gamma'])    # (C,K,K)
    w_rep = _equivalent_weight(params['rep_w'], params['rep_gamma'])       # (C,3,3)
    w_comb = w_conv + jnp.pad(w_rep, ((0, 0), (ps, ps), (ps, ps)))         # (C,K,K)
    b_comb = params['conv_b'] + params['rep_b']                            # (C,)

    inv_std = 1.0 / jnp.sqrt(params['running_var'] + EPS)
    gamma = (params['bn_gamma'] if params['bn_gamma'] is not None
             else jnp.ones((c,), jnp.float32))
    scale = gamma * inv_std
    bn_bias = params['beta'] - params['running_mean'] * scale

    # Fold the BN scale into the depthwise weights/bias: conv(x, w)*s == conv(x, w*s).
    w_folded = w_comb * scale[:, None, None]                               # (C,K,K)
    b1 = (b_comb * scale).reshape(1, c).astype(jnp.float32)                # (1,C)
    b2 = bn_bias.reshape(1, c).astype(jnp.float32)                         # (1,C)

    # Weights as (K*K, C): tap index leading, channels on the lane axis.
    w2d = jnp.transpose(w_folded, (1, 2, 0)).reshape(k * k, c).astype(jnp.float32)

    th = _pick_strip_rows(h)               # output rows per grid step
    ws = w + max(8, _round_up(pad, 8))     # scratch width: >= w + pad, multiple of 8

    kernel = _make_kernel(k, h, w, c, th, ws, pad, activation)
    out = pl.pallas_call(
        kernel,
        out_shape=jax.ShapeDtypeStruct((n, h, w, c), jnp.float32),
        grid=(n, h // th),
        in_specs=[
            pl.BlockSpec((1, h, w, c), lambda b, s: (b, 0, 0, 0)),   # image (resident per batch)
            pl.BlockSpec((1, th, w, 1), lambda b, s: (b, s, 0, 0)),  # mask strip
            pl.BlockSpec((k * k, c), lambda b, s: (0, 0)),           # folded dw weights
            pl.BlockSpec((1, c), lambda b, s: (0, 0)),               # folded conv bias
            pl.BlockSpec((1, c), lambda b, s: (0, 0)),               # folded BN bias
        ],
        out_specs=pl.BlockSpec((1, th, w, c), lambda b, s: (b, s, 0, 0)),
        scratch_shapes=[pltpu.VMEM((h + 2 * pad, ws, c), jnp.float32)],
        compiler_params=pltpu.CompilerParams(
            dimension_semantics=("parallel", "arbitrary"),
            vmem_limit_bytes=48 * 1024 * 1024),
    )(x.astype(jnp.float32), mask.astype(jnp.float32), w2d, b1, b2)
    return out


# ---------------------------------------------------------------------------
# Pure-JAX reference (unfused, straight from the raw parameters) for checking.
# ---------------------------------------------------------------------------
def _ref_depthwise_conv(x, w_eq, bias):
    c = x.shape[-1]
    rhs = jnp.transpose(w_eq, (1, 2, 0))[:, :, None, :]      # (k, k, 1, C)
    y = lax.conv_general_dilated(
        x, rhs, window_strides=(1, 1), padding='SAME',
        dimension_numbers=('NHWC', 'HWIO', 'NHWC'),
        feature_group_count=c)
    return y + bias


def depthwise_conv_block_ref(x, mask, params, *, activation='relu'):
    w_conv = _equivalent_weight(params['conv_w'], params['conv_gamma'])
    w_rep = _equivalent_weight(params['rep_w'], params['rep_gamma'])
    y = (_ref_depthwise_conv(x, w_conv, params['conv_b'])
         + _ref_depthwise_conv(x, w_rep, params['rep_b'])) * mask
    z = (y - params['running_mean']) / jnp.sqrt(params['running_var'] + EPS)
    if params['bn_gamma'] is not None:
        z = z * params['bn_gamma']
    z = z + params['beta']
    z = z * mask
    return _apply_act(z, activation)


if __name__ == "__main__":
    key = jax.random.PRNGKey(0)
    N, H, W, C = 2, 16, 16, 128      # NHWC; C=128 keeps channel/lane axis dense
    K = 5                            # module requires kernel_size >= 5, odd
    activation = 'relu'
    use_gamma = True

    ks = jax.random.split(key, 12)
    gain = math.sqrt(2.0)            # compute_gain('relu')
    params = {
        # conv (KxK depthwise) — xavier_normal_-style scale, plus module extras
        'conv_w': gain * math.sqrt(2.0 / (K * K + C * K * K))
                  * jax.random.normal(ks[0], (C, K, K), jnp.float32),
        'conv_gamma': jnp.ones((C,), jnp.float32) / math.sqrt(C)
                      + 0.05 * jax.random.normal(ks[1], (C,), jnp.float32),
        'conv_b': 0.1 * jax.random.normal(ks[2], (C,), jnp.float32),
        # rep3x3 depthwise branch
        'rep_w': gain * math.sqrt(2.0 / (9 + C * 9))
                 * jax.random.normal(ks[3], (C, 3, 3), jnp.float32),
        'rep_gamma': jnp.ones((C,), jnp.float32) / math.sqrt(C)
                     + 0.05 * jax.random.normal(ks[4], (C,), jnp.float32),
        'rep_b': 0.1 * jax.random.normal(ks[5], (C,), jnp.float32),
        # BatchNorm2d buffers / parameters (eval mode)
        'running_mean': 0.1 * jax.random.normal(ks[6], (C,), jnp.float32),
        'running_var': 1.0 + 0.1 * jax.random.uniform(ks[7], (C,), jnp.float32),
        'beta': 0.1 * jax.random.normal(ks[8], (C,), jnp.float32),
        'bn_gamma': (1.0 + 0.1 * jax.random.normal(ks[9], (C,), jnp.float32))
                    if use_gamma else None,
    }

    x = jax.random.normal(ks[10], (N, H, W, C), jnp.float32)
    mask = jnp.ones((N, H, W, 1), jnp.float32)
    mask = mask.at[1, :, W - 3:, :].set(0.0)     # non-trivial binary spatial mask

    out = depthwise_conv_block_pallas(x, mask, params, activation=activation)
    out = jax.block_until_ready(out)

    ref = depthwise_conv_block_ref(x, mask, params, activation=activation)
    max_diff = float(jnp.max(jnp.abs(out - ref)))
    if not jnp.allclose(out, ref, atol=1e-4, rtol=1e-4):
        raise AssertionError(f"Pallas output mismatch, max |diff| = {max_diff}")

    print("KERNEL_OK")
</pallas_src>

<mosaic_0001>
module attributes {stable_mosaic.version = 11 : i64} {
  func.func @kernel(%arg0: i32, %arg1: i32, %arg2: memref<1x16x16x128xf32, #tpu.memory_space<vmem>>, %arg3: memref<1x4x16x1xf32, #tpu.memory_space<vmem>>, %arg4: memref<25x128xf32, #tpu.memory_space<vmem>>, %arg5: memref<1x128xf32, #tpu.memory_space<vmem>>, %arg6: memref<1x128xf32, #tpu.memory_space<vmem>>, %arg7: memref<1x4x16x128xf32, #tpu.memory_space<vmem>>, %arg8: memref<20x24x128xf32, #tpu.memory_space<vmem>>) attributes {dimension_semantics = [#tpu.dimension_semantics<parallel>, #tpu.dimension_semantics<arbitrary>], iteration_bounds = array<i64: 2, 4>, scalar_prefetch = 0 : i64, scratch_operands = 1 : i64, tpu.core_type = #tpu.core_type<tc>, window_params = [{transform_indices = @transform_0, window_bounds = array<i64: 1, 16, 16, 128>}, {transform_indices = @transform_1, window_bounds = array<i64: 1, 4, 16, 1>}, {pipeline_mode = #tpu.pipeline_mode<synchronous>, transform_indices = @transform_2, window_bounds = array<i64: 25, 128>}, {pipeline_mode = #tpu.pipeline_mode<synchronous>, transform_indices = @transform_3, window_bounds = array<i64: 1, 128>}, {pipeline_mode = #tpu.pipeline_mode<synchronous>, transform_indices = @transform_4, window_bounds = array<i64: 1, 128>}, {transform_indices = @transform_5, window_bounds = array<i64: 1, 4, 16, 128>}]} {
    %c0_i32 = arith.constant 0 : i32
    %0 = arith.cmpi eq, %arg1, %c0_i32 : i32
    %1 = arith.extui %0 : i1 to i32
    %c0_i32_0 = arith.constant 0 : i32
    %2 = arith.cmpi ne, %1, %c0_i32_0 : i32
    scf.if %2 {
      %cst_41 = arith.constant 0.000000e+00 : f32
      %208 = vector.broadcast %cst_41 : f32 to vector<2x24x128xf32>
      %c0_42 = arith.constant 0 : index
      %c0_43 = arith.constant 0 : index
      %c0_44 = arith.constant 0 : index
      %209 = vector.load %arg8[%c0_42, %c0_43, %c0_44] : memref<20x24x128xf32, #tpu.memory_space<vmem>>, vector<2x24x128xf32>
      tpu.vector_store %arg8[%c0_42, %c0_43, %c0_44], %208 {strides = array<i32>} : memref<20x24x128xf32, #tpu.memory_space<vmem>>, vector<2x24x128xf32>,
      %c18_45 = arith.constant 18 : index
      %c0_46 = arith.constant 0 : index
      %c0_47 = arith.constant 0 : index
      %210 = vector.load %arg8[%c18_45, %c0_46, %c0_47] : memref<20x24x128xf32, #tpu.memory_space<vmem>>, vector<2x24x128xf32>
      tpu.vector_store %arg8[%c18_45, %c0_46, %c0_47], %208 {strides = array<i32>} : memref<20x24x128xf32, #tpu.memory_space<vmem>>, vector<2x24x128xf32>,
      %cst_48 = arith.constant 0.000000e+00 : f32
      %211 = vector.broadcast %cst_48 : f32 to vector<16x8x128xf32>
      %c2_49 = arith.constant 2 : index
      %c16_50 = arith.constant 16 : index
      %c0_51 = arith.constant 0 : index
      %212 = vector.load %arg8[%c2_49, %c16_50, %c0_51] : memref<20x24x128xf32, #tpu.memory_space<vmem>>, vector<16x8x128xf32>
      tpu.vector_store %arg8[%c2_49, %c16_50, %c0_51], %211 {strides = array<i32>} : memref<20x24x128xf32, #tpu.memory_space<vmem>>, vector<16x8x128xf32>,
      %c0_52 = arith.constant 0 : index
      %c0_53 = arith.constant 0 : index
      %c0_54 = arith.constant 0 : index
      %c0_55 = arith.constant 0 : index
      %213 = vector.load %arg2[%c0_52, %c0_53, %c0_54, %c0_55] : memref<1x16x16x128xf32, #tpu.memory_space<vmem>>, vector<1x4x16x128xf32>
      %214 = vector.shape_cast %213 : vector<1x4x16x128xf32> to vector<4x16x128xf32>
      %c2_56 = arith.constant 2 : index
      %c0_57 = arith.constant 0 : index
      %c0_58 = arith.constant 0 : index
      %215 = vector.load %arg8[%c2_56, %c0_57, %c0_58] : memref<20x24x128xf32, #tpu.memory_space<vmem>>, vector<4x16x128xf32>
      tpu.vector_store %arg8[%c2_56, %c0_57, %c0_58], %214 {strides = array<i32>} : memref<20x24x128xf32, #tpu.memory_space<vmem>>, vector<4x16x128xf32>,
      %c0_59 = arith.constant 0 : index
      %c4_60 = arith.constant 4 : index
      %c0_61 = arith.constant 0 : index
      %c0_62 = arith.constant 0 : index
      %216 = vector.load %arg2[%c0_59, %c4_60, %c0_61, %c0_62] : memref<1x16x16x128xf32, #tpu.memory_space<vmem>>, vector<1x4x16x128xf32>
      %217 = vector.shape_cast %216 : vector<1x4x16x128xf32> to vector<4x16x128xf32>
      %c6_63 = arith.constant 6 : index
      %c0_64 = arith.constant 0 : index
      %c0_65 = arith.constant 0 : index
      %218 = vector.load %arg8[%c6_63, %c0_64, %c0_65] : memref<20x24x128xf32, #tpu.memory_space<vmem>>, vector<4x16x128xf32>
      tpu.vector_store %arg8[%c6_63, %c0_64, %c0_65], %217 {strides = array<i32>} : memref<20x24x128xf32, #tpu.memory_space<vmem>>, vector<4x16x128xf32>,
      %c0_66 = arith.constant 0 : index
      %c8_67 = arith.constant 8 : index
      %c0_68 = arith.constant 0 : index
      %c0_69 = arith.constant 0 : index
      %219 = vector.load %arg2[%c0_66, %c8_67, %c0_68, %c0_69] : memref<1x16x16x128xf32, #tpu.memory_space<vmem>>, vector<1x4x16x128xf32>
      %220 = vector.shape_cast %219 : vector<1x4x16x128xf32> to vector<4x16x128xf32>
      %c10_70 = arith.constant 10 : index
      %c0_71 = arith.constant 0 : index
      %c0_72 = arith.constant 0 : index
      %221 = vector.load %arg8[%c10_70, %c0_71, %c0_72] : memref<20x24x128xf32, #tpu.memory_space<vmem>>, vector<4x16x128xf32>
      tpu.vector_store %arg8[%c10_70, %c0_71, %c0_72], %220 {strides = array<i32>} : memref<20x24x128xf32, #tpu.memory_space<vmem>>, vector<4x16x128xf32>,
      %c0_73 = arith.constant 0 : index
      %c12_74 = arith.constant 12 : index
      %c0_75 = arith.constant 0 : index
      %c0_76 = arith.constant 0 : index
      %222 = vector.load %arg2[%c0_73, %c12_74, %c0_75, %c0_76] : memref<1x16x16x128xf32, #tpu.memory_space<vmem>>, vector<1x4x16x128xf32>
      %223 = vector.shape_cast %222 : vector<1x4x16x128xf32> to vector<4x16x128xf32>
      %c14_77 = arith.constant 14 : index
      %c0_78 = arith.constant 0 : index
      %c0_79 = arith.constant 0 : index
      %224 = vector.load %arg8[%c14_77, %c0_78, %c0_79] : memref<20x24x128xf32, #tpu.memory_space<vmem>>, vector<4x16x128xf32>
      tpu.vector_store %arg8[%c14_77, %c0_78, %c0_79], %223 {strides = array<i32>} : memref<20x24x128xf32, #tpu.memory_space<vmem>>, vector<4x16x128xf32>,
    } else {
    }
    %c4_i32 = arith.constant 4 : i32
    %3 = arith.muli %arg1, %c4_i32 : i32
    %4 = tpu.assume_multiple %3, 4 : i32
    %5 = arith.index_cast %4 : i32 to index
    %c0 = arith.constant 0 : index
    %c0_1 = arith.constant 0 : index
    %6 = vector.load %arg8[%5, %c0, %c0_1] : memref<20x24x128xf32, #tpu.memory_space<vmem>>, vector<8x24x128xf32>
    %cst = arith.constant 0.000000e+00 : f32
    %7 = vector.broadcast %cst : f32 to vector<4x16x128xf32>
    %c2_i32 = arith.constant 2 : i32
    %8 = tpu.dynamic_rotate %6 by %c2_i32 dim 1 : vector<8x24x128xf32>, i32 -> vector<8x24x128xf32>
    %9 = vector.extract_strided_slice %8 {offsets = [0, 0, 0], sizes = [4, 16, 128], strides = [1, 1, 1]} : vector<8x24x128xf32> to vector<4x16x128xf32>
    %c0_2 = arith.constant 0 : index
    %c0_3 = arith.constant 0 : index
    %10 = vector.load %arg4[%c0_2, %c0_3] : memref<25x128xf32, #tpu.memory_space<vmem>>, vector<1x128xf32>
    %11 = vector.shape_cast %10 : vector<1x128xf32> to vector<128xf32>
    %12 = vector.shape_cast %11 : vector<128xf32> to vector<1x1x128xf32>
    %13 = vector.broadcast %12 : vector<1x1x128xf32> to vector<4x16x128xf32>
    %14 = arith.mulf %9, %13 : vector<4x16x128xf32>
    %15 = arith.addf %7, %14 : vector<4x16x128xf32>
    %16 = vector.extract_strided_slice %8 {offsets = [1, 0, 0], sizes = [4, 16, 128], strides = [1, 1, 1]} : vector<8x24x128xf32> to vector<4x16x128xf32>
    %c5 = arith.constant 5 : index
    %c0_4 = arith.constant 0 : index
    %17 = vector.load %arg4[%c5, %c0_4] : memref<25x128xf32, #tpu.memory_space<vmem>>, vector<1x128xf32>
    %18 = vector.shape_cast %17 : vector<1x128xf32> to vector<128xf32>
    %19 = vector.shape_cast %18 : vector<128xf32> to vector<1x1x128xf32>
    %20 = vector.broadcast %19 : vector<1x1x128xf32> to vector<4x16x128xf32>
    %21 = arith.mulf %16, %20 : vector<4x16x128xf32>
    %22 = arith.addf %15, %21 : vector<4x16x128xf32>
    %23 = vector.extract_strided_slice %8 {offsets = [2, 0, 0], sizes = [4, 16, 128], strides = [1, 1, 1]} : vector<8x24x128xf32> to vector<4x16x128xf32>
    %c10 = arith.constant 10 : index
    %c0_5 = arith.constant 0 : index
    %24 = vector.load %arg4[%c10, %c0_5] : memref<25x128xf32, #tpu.memory_space<vmem>>, vector<1x128xf32>
    %25 = vector.shape_cast %24 : vector<1x128xf32> to vector<128xf32>
    %26 = vector.shape_cast %25 : vector<128xf32> to vector<1x1x128xf32>
    %27 = vector.broadcast %26 : vector<1x1x128xf32> to vector<4x16x128xf32>
    %28 = arith.mulf %23, %27 : vector<4x16x128xf32>
    %29 = arith.addf %22, %28 : vector<4x16x128xf32>
    %30 = vector.extract_strided_slice %8 {offsets = [3, 0, 0], sizes = [4, 16, 128], strides = [1, 1, 1]} : vector<8x24x128xf32> to vector<4x16x128xf32>
    %c15 = arith.constant 15 : index
    %c0_6 = arith.constant 0 : index
    %31 = vector.load %arg4[%c15, %c0_6] : memref<25x128xf32, #tpu.memory_space<vmem>>, vector<1x128xf32>
    %32 = vector.shape_cast %31 : vector<1x128xf32> to vector<128xf32>
    %33 = vector.shape_cast %32 : vector<128xf32> to vector<1x1x128xf32>
    %34 = vector.broadcast %33 : vector<1x1x128xf32> to vector<4x16x128xf32>
    %35 = arith.mulf %30, %34 : vector<4x16x128xf32>
    %36 = arith.addf %29, %35 : vector<4x16x128xf32>
    %37 = vector.extract_strided_slice %8 {offsets = [4, 0, 0], sizes = [4, 16, 128], strides = [1, 1, 1]} : vector<8x24x128xf32> to vector<4x16x128xf32>
    %c20 = arith.constant 20 : index
    %c0_7 = arith.constant 0 : index
    %38 = vector.load %arg4[%c20, %c0_7] : memref<25x128xf32, #tpu.memory_space<vmem>>, vector<1x128xf32>
    %39 = vector.shape_cast %38 : vector<1x128xf32> to vector<128xf32>
    %40 = vector.shape_cast %39 : vector<128xf32> to vector<1x1x128xf32>
    %41 = vector.broadcast %40 : vector<1x1x128xf32> to vector<4x16x128xf32>
    %42 = arith.mulf %37, %41 : vector<4x16x128xf32>
    %43 = arith.addf %36, %42 : vector<4x16x128xf32>
    %c1_i32 = arith.constant 1 : i32
    %44 = tpu.dynamic_rotate %6 by %c1_i32 dim 1 : vector<8x24x128xf32>, i32 -> vector<8x24x128xf32>
    %45 = vector.extract_strided_slice %44 {offsets = [0, 0, 0], sizes = [4, 16, 128], strides = [1, 1, 1]} : vector<8x24x128xf32> to vector<4x16x128xf32>
    %c1 = arith.constant 1 : index
    %c0_8 = arith.constant 0 : index
    %46 = vector.load %arg4[%c1, %c0_8] : memref<25x128xf32, #tpu.memory_space<vmem>>, vector<1x128xf32>
    %47 = vector.shape_cast %46 : vector<1x128xf32> to vector<128xf32>
    %48 = vector.shape_cast %47 : vector<128xf32> to vector<1x1x128xf32>
    %49 = vector.broadcast %48 : vector<1x1x128xf32> to vector<4x16x128xf32>
    %50 = arith.mulf %45, %49 : vector<4x16x128xf32>
    %51 = arith.addf %43, %50 : vector<4x16x128xf32>
    %52 = vector.extract_strided_slice %44 {offsets = [1, 0, 0], sizes = [4, 16, 128], strides = [1, 1, 1]} : vector<8x24x128xf32> to vector<4x16x128xf32>
    %c6 = arith.constant 6 : index
    %c0_9 = arith.constant 0 : index
    %53 = vector.load %arg4[%c6, %c0_9] : memref<25x128xf32, #tpu.memory_space<vmem>>, vector<1x128xf32>
    %54 = vector.shape_cast %53 : vector<1x128xf32> to vector<128xf32>
    %55 = vector.shape_cast %54 : vector<128xf32> to vector<1x1x128xf32>
    %56 = vector.broadcast %55 : vector<1x1x128xf32> to vector<4x16x128xf32>
    %57 = arith.mulf %52, %56 : vector<4x16x128xf32>
    %58 = arith.addf %51, %57 : vector<4x16x128xf32>
    %59 = vector.extract_strided_slice %44 {offsets = [2, 0, 0], sizes = [4, 16, 128], strides = [1, 1, 1]} : vector<8x24x128xf32> to vector<4x16x128xf32>
    %c11 = arith.constant 11 : index
    %c0_10 = arith.constant 0 : index
    %60 = vector.load %arg4[%c11, %c0_10] : memref<25x128xf32, #tpu.memory_space<vmem>>, vector<1x128xf32>
    %61 = vector.shape_cast %60 : vector<1x128xf32> to vector<128xf32>
    %62 = vector.shape_cast %61 : vector<128xf32> to vector<1x1x128xf32>
    %63 = vector.broadcast %62 : vector<1x1x128xf32> to vector<4x16x128xf32>
    %64 = arith.mulf %59, %63 : vector<4x16x128xf32>
    %65 = arith.addf %58, %64 : vector<4x16x128xf32>
    %66 = vector.extract_strided_slice %44 {offsets = [3, 0, 0], sizes = [4, 16, 128], strides = [1, 1, 1]} : vector<8x24x128xf32> to vector<4x16x128xf32>
    %c16 = arith.constant 16 : index
    %c0_11 = arith.constant 0 : index
    %67 = vector.load %arg4[%c16, %c0_11] : memref<25x128xf32, #tpu.memory_space<vmem>>, vector<1x128xf32>
    %68 = vector.shape_cast %67 : vector<1x128xf32> to vector<128xf32>
    %69 = vector.shape_cast %68 : vector<128xf32> to vector<1x1x128xf32>
    %70 = vector.broadcast %69 : vector<1x1x128xf32> to vector<4x16x128xf32>
    %71 = arith.mulf %66, %70 : vector<4x16x128xf32>
    %72 = arith.addf %65, %71 : vector<4x16x128xf32>
    %73 = vector.extract_strided_slice %44 {offsets = [4, 0, 0], sizes = [4, 16, 128], strides = [1, 1, 1]} : vector<8x24x128xf32> to vector<4x16x128xf32>
    %c21 = arith.constant 21 : index
    %c0_12 = arith.constant 0 : index
    %74 = vector.load %arg4[%c21, %c0_12] : memref<25x128xf32, #tpu.memory_space<vmem>>, vector<1x128xf32>
    %75 = vector.shape_cast %74 : vector<1x128xf32> to vector<128xf32>
    %76 = vector.shape_cast %75 : vector<128xf32> to vector<1x1x128xf32>
    %77 = vector.broadcast %76 : vector<1x1x128xf32> to vector<4x16x128xf32>
    %78 = arith.mulf %73, %77 : vector<4x16x128xf32>
    %79 = arith.addf %72, %78 : vector<4x16x128xf32>
    %80 = vector.extract_strided_slice %6 {offsets = [0, 0, 0], sizes = [4, 16, 128], strides = [1, 1, 1]} : vector<8x24x128xf32> to vector<4x16x128xf32>
    %c2 = arith.constant 2 : index
    %c0_13 = arith.constant 0 : index
    %81 = vector.load %arg4[%c2, %c0_13] : memref<25x128xf32, #tpu.memory_space<vmem>>, vector<1x128xf32>
    %82 = vector.shape_cast %81 : vector<1x128xf32> to vector<128xf32>
    %83 = vector.shape_cast %82 : vector<128xf32> to vector<1x1x128xf32>
    %84 = vector.broadcast %83 : vector<1x1x128xf32> to vector<4x16x128xf32>
    %85 = arith.mulf %80, %84 : vector<4x16x128xf32>
    %86 = arith.addf %79, %85 : vector<4x16x128xf32>
    %87 = vector.extract_strided_slice %6 {offsets = [1, 0, 0], sizes = [4, 16, 128], strides = [1, 1, 1]} : vector<8x24x128xf32> to vector<4x16x128xf32>
    %c7 = arith.constant 7 : index
    %c0_14 = arith.constant 0 : index
    %88 = vector.load %arg4[%c7, %c0_14] : memref<25x128xf32, #tpu.memory_space<vmem>>, vector<1x128xf32>
    %89 = vector.shape_cast %88 : vector<1x128xf32> to vector<128xf32>
    %90 = vector.shape_cast %89 : vector<128xf32> to vector<1x1x128xf32>
    %91 = vector.broadcast %90 : vector<1x1x128xf32> to vector<4x16x128xf32>
    %92 = arith.mulf %87, %91 : vector<4x16x128xf32>
    %93 = arith.addf %86, %92 : vector<4x16x128xf32>
    %94 = vector.extract_strided_slice %6 {offsets = [2, 0, 0], sizes = [4, 16, 128], strides = [1, 1, 1]} : vector<8x24x128xf32> to vector<4x16x128xf32>
    %c12 = arith.constant 12 : index
    %c0_15 = arith.constant 0 : index
    %95 = vector.load %arg4[%c12, %c0_15] : memref<25x128xf32, #tpu.memory_space<vmem>>, vector<1x128xf32>
    %96 = vector.shape_cast %95 : vector<1x128xf32> to vector<128xf32>
    %97 = vector.shape_cast %96 : vector<128xf32> to vector<1x1x128xf32>
    %98 = vector.broadcast %97 : vector<1x1x128xf32> to vector<4x16x128xf32>
    %99 = arith.mulf %94, %98 : vector<4x16x128xf32>
    %100 = arith.addf %93, %99 : vector<4x16x128xf32>
    %101 = vector.extract_strided_slice %6 {offsets = [3, 0, 0], sizes = [4, 16, 128], strides = [1, 1, 1]} : vector<8x24x128xf32> to vector<4x16x128xf32>
    %c17 = arith.constant 17 : index
    %c0_16 = arith.constant 0 : index
    %102 = vector.load %arg4[%c17, %c0_16] : memref<25x128xf32, #tpu.memory_space<vmem>>, vector<1x128xf32>
    %103 = vector.shape_cast %102 : vector<1x128xf32> to vector<128xf32>
    %104 = vector.shape_cast %103 : vector<128xf32> to vector<1x1x128xf32>
    %105 = vector.broadcast %104 : vector<1x1x128xf32> to vector<4x16x128xf32>
    %106 = arith.mulf %101, %105 : vector<4x16x128xf32>
    %107 = arith.addf %100, %106 : vector<4x16x128xf32>
    %108 = vector.extract_strided_slice %6 {offsets = [4, 0, 0], sizes = [4, 16, 128], strides = [1, 1, 1]} : vector<8x24x128xf32> to vector<4x16x128xf32>
    %c22 = arith.constant 22 : index
    %c0_17 = arith.constant 0 : index
    %109 = vector.load %arg4[%c22, %c0_17] : memref<25x128xf32, #tpu.memory_space<vmem>>, vector<1x128xf32>
    %110 = vector.shape_cast %109 : vector<1x128xf32> to vector<128xf32>
    %111 = vector.shape_cast %110 : vector<128xf32> to vector<1x1x128xf32>
    %112 = vector.broadcast %111 : vector<1x1x128xf32> to vector<4x16x128xf32>
    %113 = arith.mulf %108, %112 : vector<4x16x128xf32>
    %114 = arith.addf %107, %113 : vector<4x16x128xf32>
    %c23_i32 = arith.constant 23 : i32
    %115 = tpu.dynamic_rotate %6 by %c23_i32 dim 1 : vector<8x24x128xf32>, i32 -> vector<8x24x128xf32>
    %116 = vector.extract_strided_slice %115 {offsets = [0, 0, 0], sizes = [4, 16, 128], strides = [1, 1, 1]} : vector<8x24x128xf32> to vector<4x16x128xf32>
    %c3 = arith.constant 3 : index
    %c0_18 = arith.constant 0 : index
    %117 = vector.load %arg4[%c3, %c0_18] : memref<25x128xf32, #tpu.memory_space<vmem>>, vector<1x128xf32>
    %118 = vector.shape_cast %117 : vector<1x128xf32> to vector<128xf32>
    %119 = vector.shape_cast %118 : vector<128xf32> to vector<1x1x128xf32>
    %120 = vector.broadcast %119 : vector<1x1x128xf32> to vector<4x16x128xf32>
    %121 = arith.mulf %116, %120 : vector<4x16x128xf32>
    %122 = arith.addf %114, %121 : vector<4x16x128xf32>
    %123 = vector.extract_strided_slice %115 {offsets = [1, 0, 0], sizes = [4, 16, 128], strides = [1, 1, 1]} : vector<8x24x128xf32> to vector<4x16x128xf32>
    %c8 = arith.constant 8 : index
    %c0_19 = arith.constant 0 : index
    %124 = vector.load %arg4[%c8, %c0_19] : memref<25x128xf32, #tpu.memory_space<vmem>>, vector<1x128xf32>
    %125 = vector.shape_cast %124 : vector<1x128xf32> to vector<128xf32>
    %126 = vector.shape_cast %125 : vector<128xf32> to vector<1x1x128xf32>
    %127 = vector.broadcast %126 : vector<1x1x128xf32> to vector<4x16x128xf32>
    %128 = arith.mulf %123, %127 : vector<4x16x128xf32>
    %129 = arith.addf %122, %128 : vector<4x16x128xf32>
    %130 = vector.extract_strided_slice %115 {offsets = [2, 0, 0], sizes = [4, 16, 128], strides = [1, 1, 1]} : vector<8x24x128xf32> to vector<4x16x128xf32>
    %c13 = arith.constant 13 : index
    %c0_20 = arith.constant 0 : index
    %131 = vector.load %arg4[%c13, %c0_20] : memref<25x128xf32, #tpu.memory_space<vmem>>, vector<1x128xf32>
    %132 = vector.shape_cast %131 : vector<1x128xf32> to vector<128xf32>
    %133 = vector.shape_cast %132 : vector<128xf32> to vector<1x1x128xf32>
    %134 = vector.broadcast %133 : vector<1x1x128xf32> to vector<4x16x128xf32>
    %135 = arith.mulf %130, %134 : vector<4x16x128xf32>
    %136 = arith.addf %129, %135 : vector<4x16x128xf32>
    %137 = vector.extract_strided_slice %115 {offsets = [3, 0, 0], sizes = [4, 16, 128], strides = [1, 1, 1]} : vector<8x24x128xf32> to vector<4x16x128xf32>
    %c18 = arith.constant 18 : index
    %c0_21 = arith.constant 0 : index
    %138 = vector.load %arg4[%c18, %c0_21] : memref<25x128xf32, #tpu.memory_space<vmem>>, vector<1x128xf32>
    %139 = vector.shape_cast %138 : vector<1x128xf32> to vector<128xf32>
    %140 = vector.shape_cast %139 : vector<128xf32> to vector<1x1x128xf32>
    %141 = vector.broadcast %140 : vector<1x1x128xf32> to vector<4x16x128xf32>
    %142 = arith.mulf %137, %141 : vector<4x16x128xf32>
    %143 = arith.addf %136, %142 : vector<4x16x128xf32>
    %144 = vector.extract_strided_slice %115 {offsets = [4, 0, 0], sizes = [4, 16, 128], strides = [1, 1, 1]} : vector<8x24x128xf32> to vector<4x16x128xf32>
    %c23 = arith.constant 23 : index
    %c0_22 = arith.constant 0 : index
    %145 = vector.load %arg4[%c23, %c0_22] : memref<25x128xf32, #tpu.memory_space<vmem>>, vector<1x128xf32>
    %146 = vector.shape_cast %145 : vector<1x128xf32> to vector<128xf32>
    %147 = vector.shape_cast %146 : vector<128xf32> to vector<1x1x128xf32>
    %148 = vector.broadcast %147 : vector<1x1x128xf32> to vector<4x16x128xf32>
    %149 = arith.mulf %144, %148 : vector<4x16x128xf32>
    %150 = arith.addf %143, %149 : vector<4x16x128xf32>
    %c22_i32 = arith.constant 22 : i32
    %151 = tpu.dynamic_rotate %6 by %c22_i32 dim 1 : vector<8x24x128xf32>, i32 -> vector<8x24x128xf32>
    %152 = vector.extract_strided_slice %151 {offsets = [0, 0, 0], sizes = [4, 16, 128], strides = [1, 1, 1]} : vector<8x24x128xf32> to vector<4x16x128xf32>
    %c4 = arith.constant 4 : index
    %c0_23 = arith.constant 0 : index
    %153 = vector.load %arg4[%c4, %c0_23] : memref<25x128xf32, #tpu.memory_space<vmem>>, vector<1x128xf32>
    %154 = vector.shape_cast %153 : vector<1x128xf32> to vector<128xf32>
    %155 = vector.shape_cast %154 : vector<128xf32> to vector<1x1x128xf32>
    %156 = vector.broadcast %155 : vector<1x1x128xf32> to vector<4x16x128xf32>
    %157 = arith.mulf %152, %156 : vector<4x16x128xf32>
    %158 = arith.addf %150, %157 : vector<4x16x128xf32>
    %159 = vector.extract_strided_slice %151 {offsets = [1, 0, 0], sizes = [4, 16, 128], strides = [1, 1, 1]} : vector<8x24x128xf32> to vector<4x16x128xf32>
    %c9 = arith.constant 9 : index
    %c0_24 = arith.constant 0 : index
    %160 = vector.load %arg4[%c9, %c0_24] : memref<25x128xf32, #tpu.memory_space<vmem>>, vector<1x128xf32>
    %161 = vector.shape_cast %160 : vector<1x128xf32> to vector<128xf32>
    %162 = vector.shape_cast %161 : vector<128xf32> to vector<1x1x128xf32>
    %163 = vector.broadcast %162 : vector<1x1x128xf32> to vector<4x16x128xf32>
    %164 = arith.mulf %159, %163 : vector<4x16x128xf32>
    %165 = arith.addf %158, %164 : vector<4x16x128xf32>
    %166 = vector.extract_strided_slice %151 {offsets = [2, 0, 0], sizes = [4, 16, 128], strides = [1, 1, 1]} : vector<8x24x128xf32> to vector<4x16x128xf32>
    %c14 = arith.constant 14 : index
    %c0_25 = arith.constant 0 : index
    %167 = vector.load %arg4[%c14, %c0_25] : memref<25x128xf32, #tpu.memory_space<vmem>>, vector<1x128xf32>
    %168 = vector.shape_cast %167 : vector<1x128xf32> to vector<128xf32>
    %169 = vector.shape_cast %168 : vector<128xf32> to vector<1x1x128xf32>
    %170 = vector.broadcast %169 : vector<1x1x128xf32> to vector<4x16x128xf32>
    %171 = arith.mulf %166, %170 : vector<4x16x128xf32>
    %172 = arith.addf %165, %171 : vector<4x16x128xf32>
    %173 = vector.extract_strided_slice %151 {offsets = [3, 0, 0], sizes = [4, 16, 128], strides = [1, 1, 1]} : vector<8x24x128xf32> to vector<4x16x128xf32>
    %c19 = arith.constant 19 : index
    %c0_26 = arith.constant 0 : index
    %174 = vector.load %arg4[%c19, %c0_26] : memref<25x128xf32, #tpu.memory_space<vmem>>, vector<1x128xf32>
    %175 = vector.shape_cast %174 : vector<1x128xf32> to vector<128xf32>
    %176 = vector.shape_cast %175 : vector<128xf32> to vector<1x1x128xf32>
    %177 = vector.broadcast %176 : vector<1x1x128xf32> to vector<4x16x128xf32>
    %178 = arith.mulf %173, %177 : vector<4x16x128xf32>
    %179 = arith.addf %172, %178 : vector<4x16x128xf32>
    %180 = vector.extract_strided_slice %151 {offsets = [4, 0, 0], sizes = [4, 16, 128], strides = [1, 1, 1]} : vector<8x24x128xf32> to vector<4x16x128xf32>
    %c24 = arith.constant 24 : index
    %c0_27 = arith.constant 0 : index
    %181 = vector.load %arg4[%c24, %c0_27] : memref<25x128xf32, #tpu.memory_space<vmem>>, vector<1x128xf32>
    %182 = vector.shape_cast %181 : vector<1x128xf32> to vector<128xf32>
    %183 = vector.shape_cast %182 : vector<128xf32> to vector<1x1x128xf32>
    %184 = vector.broadcast %183 : vector<1x1x128xf32> to vector<4x16x128xf32>
    %185 = arith.mulf %180, %184 : vector<4x16x128xf32>
    %186 = arith.addf %179, %185 : vector<4x16x128xf32>
    %c0_28 = arith.constant 0 : index
    %c0_29 = arith.constant 0 : index
    %c0_30 = arith.constant 0 : index
    %c0_31 = arith.constant 0 : index
    %187 = vector.load %arg3[%c0_28, %c0_29, %c0_30, %c0_31] : memref<1x4x16x1xf32, #tpu.memory_space<vmem>>, vector<1x4x16x1xf32>
    %188 = vector.shape_cast %187 : vector<1x4x16x1xf32> to vector<4x16x1xf32>
    %189 = vector.shape_cast %188 : vector<4x16x1xf32> to vector<4x16x1xf32>
    %190 = vector.broadcast %189 : vector<4x16x1xf32> to vector<4x16x128xf32>
    %c0_32 = arith.constant 0 : index
    %c0_33 = arith.constant 0 : index
    %191 = vector.load %arg5[%c0_32, %c0_33] : memref<1x128xf32, #tpu.memory_space<vmem>>, vector<1x128xf32>
    %192 = vector.shape_cast %191 : vector<1x128xf32> to vector<128xf32>
    %193 = vector.shape_cast %192 : vector<128xf32> to vector<1x1x128xf32>
    %194 = vector.broadcast %193 : vector<1x1x128xf32> to vector<4x16x128xf32>
    %195 = arith.addf %186, %194 : vector<4x16x128xf32>
    %196 = arith.mulf %195, %190 : vector<4x16x128xf32>
    %c0_34 = arith.constant 0 : index
    %c0_35 = arith.constant 0 : index
    %197 = vector.load %arg6[%c0_34, %c0_35] : memref<1x128xf32, #tpu.memory_space<vmem>>, vector<1x128xf32>
    %198 = vector.shape_cast %197 : vector<1x128xf32> to vector<128xf32>
    %199 = vector.shape_cast %198 : vector<128xf32> to vector<1x1x128xf32>
    %200 = vector.broadcast %199 : vector<1x1x128xf32> to vector<4x16x128xf32>
    %201 = arith.addf %196, %200 : vector<4x16x128xf32>
    %202 = arith.mulf %201, %190 : vector<4x16x128xf32>
    %cst_36 = arith.constant 0.000000e+00 : f32
    %203 = vector.broadcast %cst_36 : f32 to vector<4x16x128xf32>
    %204 = arith.maximumf %202, %203 : vector<4x16x128xf32>
    %c0_37 = arith.constant 0 : index
    %c0_38 = arith.constant 0 : index
    %c0_39 = arith.constant 0 : index
    %c0_40 = arith.constant 0 : index
    %205 = vector.load %arg7[%c0_37, %c0_38, %c0_39, %c0_40] : memref<1x4x16x128xf32, #tpu.memory_space<vmem>>, vector<1x4x16x128xf32>
    %206 = vector.shape_cast %205 : vector<1x4x16x128xf32> to vector<4x16x128xf32>
    %207 = vector.shape_cast %204 : vector<4x16x128xf32> to vector<1x4x16x128xf32>
    tpu.vector_store %arg7[%c0_37, %c0_38, %c0_39, %c0_40], %207 {strides = array<i32>} : memref<1x4x16x128xf32, #tpu.memory_space<vmem>>, vector<1x4x16x128xf32>,
    return
  }
  func.func @transform_0(%arg0: i32, %arg1: i32) -> (i32, i32, i32, i32) {
    %c0_i32 = arith.constant 0 : i32
    %c0_i32_0 = arith.constant 0 : i32
    %c0_i32_1 = arith.constant 0 : i32
    %c0_i32_2 = arith.constant 0 : i32
    return %arg0, %c0_i32, %c0_i32_0, %c0_i32_1 : i32, i32, i32, i32
  }
  func.func @transform_1(%arg0: i32, %arg1: i32) -> (i32, i32, i32, i32) {
    %c0_i32 = arith.constant 0 : i32
    %c0_i32_0 = arith.constant 0 : i32
    %c0_i32_1 = arith.constant 0 : i32
    return %arg0, %arg1, %c0_i32, %c0_i32_0 : i32, i32, i32, i32
  }
  func.func @transform_2(%arg0: i32, %arg1: i32) -> (i32, i32) {
    %c0_i32 = arith.constant 0 : i32
    %c0_i32_0 = arith.constant 0 : i32
    %c0_i32_1 = arith.constant 0 : i32
    return %c0_i32, %c0_i32_0 : i32, i32
  }
  func.func @transform_3(%arg0: i32, %arg1: i32) -> (i32, i32) {
    %c0_i32 = arith.constant 0 : i32
    %c0_i32_0 = arith.constant 0 : i32
    %c0_i32_1 = arith.constant 0 : i32
    return %c0_i32, %c0_i32_0 : i32, i32
  }
  func.func @transform_4(%arg0: i32, %arg1: i32) -> (i32, i32) {
    %c0_i32 = arith.constant 0 : i32
    %c0_i32_0 = arith.constant 0 : i32
    %c0_i32_1 = arith.constant 0 : i32
    return %c0_i32, %c0_i32_0 : i32, i32
  }
  func.func @transform_5(%arg0: i32, %arg1: i32) -> (i32, i32, i32, i32) {
    %c0_i32 = arith.constant 0 : i32
    %c0_i32_0 = arith.constant 0 : i32
    %c0_i32_1 = arith.constant 0 : i32
    return %arg0, %arg1, %c0_i32, %c0_i32_0 : i32, i32, i32, i32
  }
}

</mosaic_0001>

<llo_original>
// kernel: tpu_custom_call.1
$region0: #{tpu_custom_call.1}
  #allocation0 [shape = 'u32[]', space=smem, size = 0x4, offset = 0x4, fixed_abs, tag = 'smem constant byte address 0x4 - core index']
  #allocation1 [shape = 'u32[144,128]{1,0:T(1,128)}', space=vmem, size = 0x12000, scoped, tag = 'internal scratch']
  #allocation2 [shape = 'f32[20,24,128]{2,1,0:T(8,128)}', space=vmem, size = 0x3c000, scoped, tag = 'scratch operand']
  %s0 = inlined_call_operand.vmem [shape: f32[2,16,16,128], index: 0, kind: input, shape index: {}]
  %s1 = inlined_call_operand.vmem [shape: f32[2,16,16,1], index: 1, kind: input, shape index: {}]
  %s2 = inlined_call_operand.vmem [shape: f32[25,128], index: 2, kind: input, shape index: {}]
  %s3 = inlined_call_operand.vmem [shape: f32[1,128], index: 3, kind: input, shape index: {}]
  %s4 = inlined_call_operand.vmem [shape: f32[1,128], index: 4, kind: input, shape index: {}]
  %s5 = inlined_call_operand.hbm [shape: f32[2,16,16,128], index: 5, kind: output, shape index: {}]
  %s6 = sld [smem:[#allocation0]]
  $region57: #{tpu_custom_call.1} parent=0
    _
  %s8 = ssub.s32 1, %s6
  %s9 = scalar_select 0, %s8, %s6
  $region1: #{tpu_custom_call.1} parent=0
    #allocation3 [shape = 'u8[65536]{0}', space=vmem, size = 0x10000, scoped, tag = 'output window, operand 0']
    #allocation4 [shape = 's32[2]{0}', space=sflag, size = 0x8, scoped, tag = 'scoped memory for tpu_custom_call.1']
    %10 = vsyncpa [#allocation4], 0
    %s11 = scalar_lea.sflag [#allocation4], 1
    %12 = vsyncpa %s11, 0
    loop: start=0, step=1, limit=10
    $region2: #{tpu_custom_call.1} parent=1 // loop_pre_header
      _
    $region3: #{tpu_custom_call.1} parent=1 // loop_header
      %s14 = sphi 0, %s18
      %p15 = scmp.ge.s32.totalorder %s14, 10
      %s21 = sphi 0, %s33
      %s22 = sphi 0, %s29
      %s23 = sphi 0, %s21
      %s24 = sphi 0, %s22
      %s25 = sphi 0, %s23
      %s26 = sphi 0, %s24
      %s36 = sphi 0, %s38
      %s39 = sphi 0, %s36
      %s40 = sphi 0, %s39
      %s56 = sphi 0, %s40
      %s64 = sphi 0, %s66
      %s67 = sphi 0, %s64
      %s68 = sphi 0, %s67
      %s84 = sphi 0, %s68
      %s88 = sphi 0, %s88
      %s90 = sphi 0, %s88
      %s91 = sphi 0, %s90
      %s105 = sphi 0, %s91
      %s109 = sphi 0, %s109
      %s111 = sphi 0, %s109
      %s112 = sphi 0, %s111
      %s126 = sphi 0, %s112
      %s130 = sphi 0, %s130
      %s132 = sphi 0, %s130
      %s133 = sphi 0, %s132
      %s147 = sphi 0, %s133
      %s155 = sphi 0, %s157
      %s158 = sphi 0, %s155
      %s159 = sphi 0, %s158
      %s175 = sphi 0, %s159
    $region4: #{tpu_custom_call.1} parent=1 // loop_header_branch
      %17 = sbr.rel (%p15) target = $region8
    $region5: #{tpu_custom_call.1} parent=1 // loop_body
      %s19 = ssub.s32 %s14, 1
      %s20 = ssub.s32 %s14, 2
      %s27 = sadd.s32 1, %s22
      %p28 = scmp.ge.s32.totalorder %s27, 4
      %s29 = scalar_select %p28, 0, %s27
      %s30 = sadd.s32 1, %s21
      %s31 = scalar_select %p28, %s30, %s21
      %p32 = scmp.ge.s32.totalorder %s31, 2
      %s33 = scalar_select %p32, 0, %s31
      %s34 = ssub.s32 %s21, %s33
      %p35 = scmp.eq.s32.totalorder %s34, 0
      %s37 = sadd.s32 %s36, 1
      %s38 = scalar_select %p35, %s36, %s37
      %p41 = pneg %p35
      %p42 = scmp.eq.s32.totalorder %s14, 7
      %p43 = por %p41, %p42
      %p44 = scmp.ne.s32.totalorder %s36, %s39
      %p45 = scmp.eq.s32.totalorder %s14, 0
      %p46 = por %p44, %p45
      %p47 = scmp.ne.s32.totalorder %s36, %s39
      %p48 = scmp.eq.s32.totalorder %s19, 7
      %p49 = por %p47, %p48
      %p50 = scmp.ne.s32.totalorder %s39, %s40
      %p51 = scmp.eq.s32.totalorder %s19, 0
      %p52 = por %p50, %p51
      %p53 = scmp.ne.s32.totalorder %s39, %s40
      %p54 = scmp.eq.s32.totalorder %s20, 7
      %p55 = por %p53, %p54
      %p57 = scmp.ne.s32.totalorder %s40, %s56
      %p58 = scmp.eq.s32.totalorder %s20, 0
      %p59 = por %p57, %p58
      %s60 = ssub.s32 %s21, %s33
      %s61 = ssub.s32 %s22, %s29
      %s62 = sor.u32 %s60, %s61
      %p63 = scmp.eq.s32.totalorder %s62, 0
      %s65 = sadd.s32 %s64, 1
      %s66 = scalar_select %p63, %s64, %s65
      %p69 = pneg %p63
      %p70 = scmp.eq.s32.totalorder %s14, 7
      %p71 = por %p69, %p70
      %p72 = scmp.ne.s32.totalorder %s64, %s67
      %p73 = scmp.eq.s32.totalorder %s14, 0
      %p74 = por %p72, %p73
      %p75 = scmp.ne.s32.totalorder %s64, %s67
      %p76 = scmp.eq.s32.totalorder %s19, 7
      %p77 = por %p75, %p76
      %p78 = scmp.ne.s32.totalorder %s67, %s68
      %p79 = scmp.eq.s32.totalorder %s19, 0
      %p80 = por %p78, %p79
      %p81 = scmp.ne.s32.totalorder %s67, %s68
      %p82 = scmp.eq.s32.totalorder %s20, 7
      %p83 = por %p81, %p82
      %p85 = scmp.ne.s32.totalorder %s68, %s84
      %p86 = scmp.eq.s32.totalorder %s20, 0
      %p87 = por %p85, %p86
      %s89 = sadd.s32 %s88, 1
      %p92 = scmp.eq.s32.totalorder %s14, 7
      %p93 = scmp.ne.s32.totalorder %s88, %s90
      %p94 = scmp.eq.s32.totalorder %s14, 0
      %p95 = por %p93, %p94
      %p96 = scmp.ne.s32.totalorder %s88, %s90
      %p97 = scmp.eq.s32.totalorder %s19, 7
      %p98 = por %p96, %p97
      %p99 = scmp.ne.s32.totalorder %s90, %s91
      %p100 = scmp.eq.s32.totalorder %s19, 0
      %p101 = por %p99, %p100
      %p102 = scmp.ne.s32.totalorder %s90, %s91
      %p103 = scmp.eq.s32.totalorder %s20, 7
      %p104 = por %p102, %p103
      %p106 = scmp.ne.s32.totalorder %s91, %s105
      %p107 = scmp.eq.s32.totalorder %s20, 0
      %p108 = por %p106, %p107
      %s110 = sadd.s32 %s109, 1
      %p113 = scmp.eq.s32.totalorder %s14, 7
      %p114 = scmp.ne.s32.totalorder %s109, %s111
      %p115 = scmp.eq.s32.totalorder %s14, 0
      %p116 = por %p114, %p115
      %p117 = scmp.ne.s32.totalorder %s109, %s111
      %p118 = scmp.eq.s32.totalorder %s19, 7
      %p119 = por %p117, %p118
      %p120 = scmp.ne.s32.totalorder %s111, %s112
      %p121 = scmp.eq.s32.totalorder %s19, 0
      %p122 = por %p120, %p121
      %p123 = scmp.ne.s32.totalorder %s111, %s112
      %p124 = scmp.eq.s32.totalorder %s20, 7
      %p125 = por %p123, %p124
      %p127 = scmp.ne.s32.totalorder %s112, %s126
      %p128 = scmp.eq.s32.totalorder %s20, 0
      %p129 = por %p127, %p128
      %s131 = sadd.s32 %s130, 1
      %p134 = scmp.eq.s32.totalorder %s14, 7
      %p135 = scmp.ne.s32.totalorder %s130, %s132
      %p136 = scmp.eq.s32.totalorder %s14, 0
      %p137 = por %p135, %p136
      %p138 = scmp.ne.s32.totalorder %s130, %s132
      %p139 = scmp.eq.s32.totalorder %s19, 7
      %p140 = por %p138, %p139
      %p141 = scmp.ne.s32.totalorder %s132, %s133
      %p142 = scmp.eq.s32.totalorder %s19, 0
      %p143 = por %p141, %p142
      %p144 = scmp.ne.s32.totalorder %s132, %s133
      %p145 = scmp.eq.s32.totalorder %s20, 7
      %p146 = por %p144, %p145
      %p148 = scmp.ne.s32.totalorder %s133, %s147
      %p149 = scmp.eq.s32.totalorder %s20, 0
      %p150 = por %p148, %p149
      %s151 = ssub.s32 %s21, %s33
      %s152 = ssub.s32 %s22, %s29
      %s153 = sor.u32 %s151, %s152
      %p154 = scmp.eq.s32.totalorder %s153, 0
      %s156 = sadd.s32 %s155, 1
      %s157 = scalar_select %p154, %s155, %s156
      %p160 = pneg %p154
      %p161 = scmp.eq.s32.totalorder %s14, 7
      %p162 = por %p160, %p161
      %p163 = scmp.ne.s32.totalorder %s155, %s158
      %p164 = scmp.eq.s32.totalorder %s14, 0
      %p165 = por %p163, %p164
      %p166 = scmp.ne.s32.totalorder %s155, %s158
      %p167 = scmp.eq.s32.totalorder %s19, 7
      %p168 = por %p166, %p167
      %p169 = scmp.ne.s32.totalorder %s158, %s159
      %p170 = scmp.eq.s32.totalorder %s19, 0
      %p171 = por %p169, %p170
      %p172 = scmp.ne.s32.totalorder %s158, %s159
      %p173 = scmp.eq.s32.totalorder %s20, 7
      %p174 = por %p172, %p173
      %p176 = scmp.ne.s32.totalorder %s159, %s175
      %p177 = scmp.eq.s32.totalorder %s20, 0
      %p178 = por %p176, %p177
      %p179 = scmp.le.s32.totalorder 1, %s14
      %p180 = scmp.lt.s32.totalorder %s14, 9
      %p181 = pnand %p179, %p180
      %p182 = pneg %p181
      // Predicated region
      $region9: #{tpu_custom_call.1} parent=5 // pred_check
        _
      $region10: #{tpu_custom_call.1} parent=5 // pred_check_branch
        %184 = sbr.rel (%p181) target = $region12
      $region11: #{tpu_custom_call.1} parent=5 // pred_region
        %s185 = ssub.s32 %s14, 1
        // Predicated region
        $region13: #{tpu_custom_call.1} parent=11 // pred_check
          %p186 = pneg %p101
        $region14: #{tpu_custom_call.1} parent=11 // pred_check_branch
          %188 = sbr.rel (%p186) target = $region16
        $region15: #{tpu_custom_call.1} parent=11 // pred_region
          _
        $region16: #{tpu_custom_call.1} parent=11 // pred_fallthru
          _
        // Predicated region
        $region17: #{tpu_custom_call.1} parent=11 // pred_check
          %p189 = pneg %p122
        $region18: #{tpu_custom_call.1} parent=11 // pred_check_branch
          %191 = sbr.rel (%p189) target = $region20
        $region19: #{tpu_custom_call.1} parent=11 // pred_region
          _
        $region20: #{tpu_custom_call.1} parent=11 // pred_fallthru
          _
        // Predicated region
        $region21: #{tpu_custom_call.1} parent=11 // pred_check
          %p192 = pneg %p143
        $region22: #{tpu_custom_call.1} parent=11 // pred_check_branch
          %194 = sbr.rel (%p192) target = $region24
        $region23: #{tpu_custom_call.1} parent=11 // pred_region
          _
        $region24: #{tpu_custom_call.1} parent=11 // pred_fallthru
          _
      $region12: #{tpu_custom_call.1} parent=5 // pred_fallthru
        _
      %p195 = scmp.lt.s32.totalorder %s14, 8
      // Predicated region
      $region25: #{tpu_custom_call.1} parent=5 // pred_check
        %p196 = pneg %p195
      $region26: #{tpu_custom_call.1} parent=5 // pred_check_branch
        %198 = sbr.rel (%p196) target = $region28
      $region27: #{tpu_custom_call.1} parent=5 // pred_region
        // Predicated region
        $region29: #{tpu_custom_call.1} parent=27 // pred_check
          %p199 = pneg %p46
        $region30: #{tpu_custom_call.1} parent=27 // pred_check_branch
          %201 = sbr.rel (%p199) target = $region32
        $region31: #{tpu_custom_call.1} parent=27 // pred_region
          %p202 = scmp.lt.s32.totalorder %s21, 1
          %s203 = scalar_select %p202, %s21, 1
          %s204 = smul.addr %s203, 32
          %s205 = smul.addr %s204, 8
          %s206 = scalar_lea.vmem %s0, %s205
        $region32: #{tpu_custom_call.1} parent=27 // pred_fallthru
          _
        // Predicated region
        $region33: #{tpu_custom_call.1} parent=27 // pred_check
          %p207 = pneg %p74
        $region34: #{tpu_custom_call.1} parent=27 // pred_check_branch
          %209 = sbr.rel (%p207) target = $region36
        $region35: #{tpu_custom_call.1} parent=27 // pred_region
          %s210 = smul.u32 4, %s22
          %p211 = scmp.lt.s32.totalorder %s21, 1
          %s212 = scalar_select %p211, %s21, 1
          %p213 = scmp.lt.s32.totalorder %s210, 15
          %s214 = scalar_select %p213, %s210, 15
          %s215 = smul.addr %s214, 2
          %s216 = smul.addr %s212, 32
          %s217 = sadd.s32 %s215, %s216
          %s218 = smul.addr %s217, 8
          %s219 = scalar_lea.vmem %s1, %s218
          %s220 = smul.u32 4, %s22
        $region36: #{tpu_custom_call.1} parent=27 // pred_fallthru
          _
      $region28: #{tpu_custom_call.1} parent=5 // pred_fallthru
        _
      %p221 = scmp.le.s32.totalorder 1, %s14
      %p222 = scmp.lt.s32.totalorder %s14, 9
      %p223 = pnand %p221, %p222
      %p224 = pneg %p223
      // Predicated region
      $region37: #{tpu_custom_call.1} parent=5 // pred_check
        _
      $region38: #{tpu_custom_call.1} parent=5 // pred_check_branch
        %226 = sbr.rel (%p223) target = $region40
      $region39: #{tpu_custom_call.1} parent=5 // pred_region
        %s227 = ssub.s32 %s14, 1
        %p228 = scmp.lt.s32.totalorder %s23, 1
        %s229 = scalar_select %p228, %s23, 1
        %s230 = smul.addr %s229, 32
        %s231 = smul.addr %s230, 8
        %s232 = scalar_lea.vmem %s0, %s231
        %p233 = pneg %p52
        %p234 = pneg %p49
        %s235 = smul.u32 4, %s24
        %p236 = scmp.lt.s32.totalorder %s23, 1
        %s237 = scalar_select %p236, %s23, 1
        %p238 = scmp.lt.s32.totalorder %s235, 15
        %s239 = scalar_select %p238, %s235, 15
        %s240 = smul.addr %s239, 2
        %s241 = smul.addr %s237, 32
        %s242 = sadd.s32 %s240, %s241
        %s243 = smul.addr %s242, 8
        %s244 = scalar_lea.vmem %s1, %s243
        %p245 = pneg %p80
        %p246 = pneg %p77
        %p247 = pneg %p101
        %p248 = pneg %p98
        %p249 = pneg %p122
        %p250 = pneg %p119
        %p251 = pneg %p143
        %p252 = pneg %p140
        %p253 = pneg %p171
        %p254 = pneg %p168
        %s255 = sand.u32 %s158, 1
        %s256 = scalar_lea.sflag [#allocation4], %s255
        %s257 = sand.u32 %s158, 1
        %s258 = smul.addr %s257, 64
        %s259 = scalar_lea.vmem [#allocation3], %s258
        %p260 = scmp.lt.s32.totalorder %s23, 1
        %s261 = scalar_select %p260, %s23, 1
        %s262 = smul.addr %s261, 32
        %s263 = smul.addr %s262, 8
        %s264 = scalar_lea.vmem %s0, %s263
        %s265 = smul.u32 4, %s24
        %p266 = scmp.lt.s32.totalorder %s23, 1
        %s267 = scalar_select %p266, %s23, 1
        %p268 = scmp.lt.s32.totalorder %s265, 15
        %s269 = scalar_select %p268, %s265, 15
        %s270 = smul.addr %s269, 2
        %s271 = smul.addr %s267, 32
        %s272 = sadd.s32 %s270, %s271
        %s273 = smul.addr %s272, 8
        %s274 = scalar_lea.vmem %s1, %s273
        %s275 = smul.u32 4, %s24
        %s276 = smul.u32 4, %s24
        %p277 = scmp.eq.s32.totalorder %s24, 0
        // Predicated region
        $region41: #{tpu_custom_call.1} parent=39 // pred_check
          %p278 = pneg %p277
        $region42: #{tpu_custom_call.1} parent=39 // pred_check_branch
          %280 = sbr.rel (%p278) target = $region44
        $region43: #{tpu_custom_call.1} parent=39 // pred_region
          %281 = vst [vmem:[#allocation2] sm:$0xff] 0.0
          %282 = vst [vmem:[#allocation2 + $0x8] sm:$0xff] 0.0
          %283 = vst [vmem:[#allocation2 + $0x10] sm:$0xff] 0.0
          %284 = vst [vmem:[#allocation2 + $0x18] sm:$0xff] 0.0
          %285 = vst [vmem:[#allocation2 + $0x20] sm:$0xff] 0.0
          %286 = vst [vmem:[#allocation2 + $0x28] sm:$0xff] 0.0
          %s287 = scalar_lea.vmem [#allocation2], 432
          %288 = vst [vmem:[%s287] sm:$0xff] 0.0
          %289 = vst [vmem:[%s287 + $0x8] sm:$0xff] 0.0
          %290 = vst [vmem:[%s287 + $0x10] sm:$0xff] 0.0
          %291 = vst [vmem:[%s287 + $0x18] sm:$0xff] 0.0
          %292 = vst [vmem:[%s287 + $0x20] sm:$0xff] 0.0
          %293 = vst [vmem:[%s287 + $0x28] sm:$0xff] 0.0
          %s294 = scalar_lea.vmem [#allocation2], 48
          %295 = vst [vmem:[%s294 + $0x10] sm:$0xff] 0.0
          %296 = vst [vmem:[%s294 + $0x28] sm:$0xff] 0.0
          %297 = vst [vmem:[%s294 + $0x40] sm:$0xff] 0.0
          %298 = vst [vmem:[%s294 + $0x58] sm:$0xff] 0.0
          %299 = vst [vmem:[%s294 + $0x70] sm:$0xff] 0.0
          %300 = vst [vmem:[%s294 + $0x88] sm:$0xff] 0.0
          %301 = vst [vmem:[%s294 + $0xa0] sm:$0xff] 0.0
          %302 = vst [vmem:[%s294 + $0xb8] sm:$0xff] 0.0
          %303 = vst [vmem:[%s294 + $0xd0] sm:$0xff] 0.0
          %304 = vst [vmem:[%s294 + $0xe8] sm:$0xff] 0.0
          %305 = vst [vmem:[%s294 + $0x100] sm:$0xff] 0.0
          %306 = vst [vmem:[%s294 + $0x118] sm:$0xff] 0.0
          %307 = vst [vmem:[%s294 + $0x130] sm:$0xff] 0.0
          %308 = vst [vmem:[%s294 + $0x148] sm:$0xff] 0.0
          %309 = vst [vmem:[%s294 + $0x160] sm:$0xff] 0.0
          %310 = vst [vmem:[%s294 + $0x178] sm:$0xff] 0.0
          %v311 = vld [vmem:[%s264] sm:$0xff]
          %v312 = vld [vmem:[%s264 + $0x8] sm:$0xff]
          %v313 = vld [vmem:[%s264 + $0x10] sm:$0xff]
          %v314 = vld [vmem:[%s264 + $0x18] sm:$0xff]
          %v315 = vld [vmem:[%s264 + $0x20] sm:$0xff]
          %v316 = vld [vmem:[%s264 + $0x28] sm:$0xff]
          %v317 = vld [vmem:[%s264 + $0x30] sm:$0xff]
          %v318 = vld [vmem:[%s264 + $0x38] sm:$0xff]
          %319 = vst [vmem:[%s294] sm:$0xff] %v311
          %320 = vst [vmem:[%s294 + $0x8] sm:$0xff] %v312
          %321 = vst [vmem:[%s294 + $0x18] sm:$0xff] %v313
          %322 = vst [vmem:[%s294 + $0x20] sm:$0xff] %v314
          %323 = vst [vmem:[%s294 + $0x30] sm:$0xff] %v315
          %324 = vst [vmem:[%s294 + $0x38] sm:$0xff] %v316
          %325 = vst [vmem:[%s294 + $0x48] sm:$0xff] %v317
          %326 = vst [vmem:[%s294 + $0x50] sm:$0xff] %v318
          %s327 = scalar_lea.vmem %s264, 64
          %v328 = vld [vmem:[%s327] sm:$0xff]
          %v329 = vld [vmem:[%s327 + $0x8] sm:$0xff]
          %v330 = vld [vmem:[%s327 + $0x10] sm:$0xff]
          %v331 = vld [vmem:[%s327 + $0x18] sm:$0xff]
          %v332 = vld [vmem:[%s327 + $0x20] sm:$0xff]
          %v333 = vld [vmem:[%s327 + $0x28] sm:$0xff]
          %v334 = vld [vmem:[%s327 + $0x30] sm:$0xff]
          %v335 = vld [vmem:[%s327 + $0x38] sm:$0xff]
          %s336 = scalar_lea.vmem [#allocation2], 144
          %337 = vst [vmem:[%s336] sm:$0xff] %v328
          %338 = vst [vmem:[%s336 + $0x8] sm:$0xff] %v329
          %339 = vst [vmem:[%s336 + $0x18] sm:$0xff] %v330
          %340 = vst [vmem:[%s336 + $0x20] sm:$0xff] %v331
          %341 = vst [vmem:[%s336 + $0x30] sm:$0xff] %v332
          %342 = vst [vmem:[%s336 + $0x38] sm:$0xff] %v333
          %343 = vst [vmem:[%s336 + $0x48] sm:$0xff] %v334
          %344 = vst [vmem:[%s336 + $0x50] sm:$0xff] %v335
          %s345 = scalar_lea.vmem %s264, 128
          %v346 = vld [vmem:[%s345] sm:$0xff]
          %v347 = vld [vmem:[%s345 + $0x8] sm:$0xff]
          %v348 = vld [vmem:[%s345 + $0x10] sm:$0xff]
          %v349 = vld [vmem:[%s345 + $0x18] sm:$0xff]
          %v350 = vld [vmem:[%s345 + $0x20] sm:$0xff]
          %v351 = vld [vmem:[%s345 + $0x28] sm:$0xff]
          %v352 = vld [vmem:[%s345 + $0x30] sm:$0xff]
          %v353 = vld [vmem:[%s345 + $0x38] sm:$0xff]
          %s354 = scalar_lea.vmem [#allocation2], 240
          %355 = vst [vmem:[%s354] sm:$0xff] %v346
          %356 = vst [vmem:[%s354 + $0x8] sm:$0xff] %v347
          %357 = vst [vmem:[%s354 + $0x18] sm:$0xff] %v348
          %358 = vst [vmem:[%s354 + $0x20] sm:$0xff] %v349
          %359 = vst [vmem:[%s354 + $0x30] sm:$0xff] %v350
          %360 = vst [vmem:[%s354 + $0x38] sm:$0xff] %v351
          %361 = vst [vmem:[%s354 + $0x48] sm:$0xff] %v352
          %362 = vst [vmem:[%s354 + $0x50] sm:$0xff] %v353
          %s363 = scalar_lea.vmem %s264, 192
          %v364 = vld [vmem:[%s363] sm:$0xff]
          %v365 = vld [vmem:[%s363 + $0x8] sm:$0xff]
          %v366 = vld [vmem:[%s363 + $0x10] sm:$0xff]
          %v367 = vld [vmem:[%s363 + $0x18] sm:$0xff]
          %v368 = vld [vmem:[%s363 + $0x20] sm:$0xff]
          %v369 = vld [vmem:[%s363 + $0x28] sm:$0xff]
          %v370 = vld [vmem:[%s363 + $0x30] sm:$0xff]
          %v371 = vld [vmem:[%s363 + $0x38] sm:$0xff]
          %s372 = scalar_lea.vmem [#allocation2], 336
          %373 = vst [vmem:[%s372] sm:$0xff] %v364
          %374 = vst [vmem:[%s372 + $0x8] sm:$0xff] %v365
          %375 = vst [vmem:[%s372 + $0x18] sm:$0xff] %v366
          %376 = vst [vmem:[%s372 + $0x20] sm:$0xff] %v367
          %377 = vst [vmem:[%s372 + $0x30] sm:$0xff] %v368
          %378 = vst [vmem:[%s372 + $0x38] sm:$0xff] %v369
          %379 = vst [vmem:[%s372 + $0x48] sm:$0xff] %v370
          %380 = vst [vmem:[%s372 + $0x50] sm:$0xff] %v371
        $region44: #{tpu_custom_call.1} parent=39 // pred_fallthru
          _
        %s381 = smul.u32 %s24, 4
        %s382 = smul.u32 %s381, 24
        %s383 = scalar_lea.vmem [#allocation2], %s382
        %v384 = vld [vmem:[%s383] sm:$0xff]
        %v385 = vld [vmem:[%s383 + $0x8] sm:$0xff]
        %v386 = vld [vmem:[%s383 + $0x10] sm:$0xff]
        %v387 = vld [vmem:[%s383 + $0x18] sm:$0xff]
        %v388 = vld [vmem:[%s383 + $0x20] sm:$0xff]
        %v389 = vld [vmem:[%s383 + $0x28] sm:$0xff]
        %v390 = vld [vmem:[%s383 + $0x30] sm:$0xff]
        %v391 = vld [vmem:[%s383 + $0x38] sm:$0xff]
        %v392 = vld [vmem:[%s383 + $0x40] sm:$0xff]
        %v393 = vld [vmem:[%s383 + $0x48] sm:$0xff]
        %v394 = vld [vmem:[%s383 + $0x50] sm:$0xff]
        %v395 = vld [vmem:[%s383 + $0x58] sm:$0xff]
        %v396 = vld [vmem:[%s383 + $0x60] sm:$0xff]
        %v397 = vld [vmem:[%s383 + $0x68] sm:$0xff]
        %v398 = vld [vmem:[%s383 + $0x70] sm:$0xff]
        %v399 = vld [vmem:[%s383 + $0x78] sm:$0xff]
        %v400 = vld [vmem:[%s383 + $0x80] sm:$0xff]
        %v401 = vld [vmem:[%s383 + $0x88] sm:$0xff]
        %v402 = vld [vmem:[%s383 + $0x90] sm:$0xff]
        %v403 = vld [vmem:[%s383 + $0x98] sm:$0xff]
        %v404 = vld [vmem:[%s383 + $0xa0] sm:$0xff]
        %v405 = vld [vmem:[%s383 + $0xa8] sm:$0xff]
        %v406 = vld [vmem:[%s383 + $0xb0] sm:$0xff]
        %v407 = vld [vmem:[%s383 + $0xb8] sm:$0xff]
        %v408 = vrot.slane %v384, 6
        %v409 = vrot.slane %v387, 6
        %v410 = vrot.slane %v390, 6
        %v411 = vrot.slane %v393, 6
        %v412 = vrot.slane %v396, 6
        %v413 = vrot.slane %v399, 6
        %v414 = vrot.slane %v402, 6
        %v415 = vrot.slane %v405, 6
        %v416 = vrot.slane %v385, 6
        %v417 = vrot.slane %v388, 6
        %v418 = vrot.slane %v391, 6
        %v419 = vrot.slane %v394, 6
        %v420 = vrot.slane %v397, 6
        %v421 = vrot.slane %v400, 6
        %v422 = vrot.slane %v403, 6
        %v423 = vrot.slane %v406, 6
        %v424 = vrot.slane %v386, 6
        %v425 = vrot.slane %v389, 6
        %v426 = vrot.slane %v392, 6
        %v427 = vrot.slane %v395, 6
        %v428 = vrot.slane %v398, 6
        %v429 = vrot.slane %v401, 6
        %v430 = vrot.slane %v404, 6
        %v431 = vrot.slane %v407, 6
        %v432 = vlaneseq
        %v433 = vshrl.u32 %v432, 7
        %vm434 = vcmp.lt.s32.totalorder %v433, 2
        %v435 = vsel %vm434, %v408, %v416
        %v436 = vsel %vm434, %v409, %v417
        %v437 = vsel %vm434, %v410, %v418
        %v438 = vsel %vm434, %v411, %v419
        %v439 = vsel %vm434, %v412, %v420
        %v440 = vsel %vm434, %v413, %v421
        %v441 = vsel %vm434, %v414, %v422
        %v442 = vsel %vm434, %v415, %v423
        %v443 = vsel %vm434, %v424, %v408
        %v444 = vsel %vm434, %v425, %v409
        %v445 = vsel %vm434, %v426, %v410
        %v446 = vsel %vm434, %v427, %v411
        %v447 = vsel %vm434, %v428, %v412
        %v448 = vsel %vm434, %v429, %v413
        %v449 = vsel %vm434, %v430, %v414
        %v450 = vsel %vm434, %v431, %v415
        %v451 = vld [vmem:[%s2] sm:$0x1]
        %v452 = vlaneseq
        %v453 = vshrl.u32 %v452, 7
        %v454 = vsub.s32 0, %v453
        %v455 = vrot.slane %v451, %v454
        %v456 = vmul.f32 %v443, %v455
        %v457 = vmul.f32 %v435, %v455
        %v458 = vmul.f32 %v444, %v455
        %v459 = vmul.f32 %v436, %v455
        %v460 = vmul.f32 %v445, %v455
        %v461 = vmul.f32 %v437, %v455
        %v462 = vmul.f32 %v446, %v455
        %v463 = vmul.f32 %v438, %v455
        %v464 = vadd.f32 %v456, 0.0
        %v465 = vadd.f32 %v457, 0.0
        %v466 = vadd.f32 %v458, 0.0
        %v467 = vadd.f32 %v459, 0.0
        %v468 = vadd.f32 %v460, 0.0
        %v469 = vadd.f32 %v461, 0.0
        %v470 = vadd.f32 %v462, 0.0
        %v471 = vadd.f32 %v463, 0.0
        %v472 = vld [vmem:[%s2 + $0x5] sm:$0x1]
        %v473 = vlaneseq
        %v474 = vshrl.u32 %v473, 7
        %v475 = vsub.s32 0, %v474
        %v476 = vrot.slane %v472, %v475
        %v477 = vmul.f32 %v444, %v476
        %v478 = vmul.f32 %v436, %v476
        %v479 = vmul.f32 %v445, %v476
        %v480 = vmul.f32 %v437, %v476
        %v481 = vmul.f32 %v446, %v476
        %v482 = vmul.f32 %v438, %v476
        %v483 = vmul.f32 %v447, %v476
        %v484 = vmul.f32 %v439, %v476
        %v485 = vadd.f32 %v464, %v477
        %v486 = vadd.f32 %v465, %v478
        %v487 = vadd.f32 %v466, %v479
        %v488 = vadd.f32 %v467, %v480
        %v489 = vadd.f32 %v468, %v481
        %v490 = vadd.f32 %v469, %v482
        %v491 = vadd.f32 %v470, %v483
        %v492 = vadd.f32 %v471, %v484
        %v493 = vld [vmem:[%s2 + $0xa] sm:$0x1]
        %v494 = vlaneseq
        %v495 = vshrl.u32 %v494, 7
        %v496 = vsub.s32 0, %v495
        %v497 = vrot.slane %v493, %v496
        %v498 = vmul.f32 %v445, %v497
        %v499 = vmul.f32 %v437, %v497
        %v500 = vmul.f32 %v446, %v497
        %v501 = vmul.f32 %v438, %v497
        %v502 = vmul.f32 %v447, %v497
        %v503 = vmul.f32 %v439, %v497
        %v504 = vmul.f32 %v448, %v497
        %v505 = vmul.f32 %v440, %v497
        %v506 = vadd.f32 %v485, %v498
        %v507 = vadd.f32 %v486, %v499
        %v508 = vadd.f32 %v487, %v500
        %v509 = vadd.f32 %v488, %v501
        %v510 = vadd.f32 %v489, %v502
        %v511 = vadd.f32 %v490, %v503
        %v512 = vadd.f32 %v491, %v504
        %v513 = vadd.f32 %v492, %v505
        %v514 = vld [vmem:[%s2 + $0xf] sm:$0x1]
        %v515 = vlaneseq
        %v516 = vshrl.u32 %v515, 7
        %v517 = vsub.s32 0, %v516
        %v518 = vrot.slane %v514, %v517
        %v519 = vmul.f32 %v446, %v518
        %v520 = vmul.f32 %v438, %v518
        %v521 = vmul.f32 %v447, %v518
        %v522 = vmul.f32 %v439, %v518
        %v523 = vmul.f32 %v448, %v518
        %v524 = vmul.f32 %v440, %v518
        %v525 = vmul.f32 %v449, %v518
        %v526 = vmul.f32 %v441, %v518
        %v527 = vadd.f32 %v506, %v519
        %v528 = vadd.f32 %v507, %v520
        %v529 = vadd.f32 %v508, %v521
        %v530 = vadd.f32 %v509, %v522
        %v531 = vadd.f32 %v510, %v523
        %v532 = vadd.f32 %v511, %v524
        %v533 = vadd.f32 %v512, %v525
        %v534 = vadd.f32 %v513, %v526
        %v535 = vld [vmem:[%s2 + $0x14] sm:$0x1]
        %v536 = vlaneseq
        %v537 = vshrl.u32 %v536, 7
        %v538 = vsub.s32 0, %v537
        %v539 = vrot.slane %v535, %v538
        %v540 = vmul.f32 %v447, %v539
        %v541 = vmul.f32 %v439, %v539
        %v542 = vmul.f32 %v448, %v539
        %v543 = vmul.f32 %v440, %v539
        %v544 = vmul.f32 %v449, %v539
        %v545 = vmul.f32 %v441, %v539
        %v546 = vmul.f32 %v450, %v539
        %v547 = vmul.f32 %v442, %v539
        %v548 = vadd.f32 %v527, %v540
        %v549 = vadd.f32 %v528, %v541
        %v550 = vadd.f32 %v529, %v542
        %v551 = vadd.f32 %v530, %v543
        %v552 = vadd.f32 %v531, %v544
        %v553 = vadd.f32 %v532, %v545
        %v554 = vadd.f32 %v533, %v546
        %v555 = vadd.f32 %v534, %v547
        %v556 = vrot.slane %v384, 7
        %v557 = vrot.slane %v387, 7
        %v558 = vrot.slane %v390, 7
        %v559 = vrot.slane %v393, 7
        %v560 = vrot.slane %v396, 7
        %v561 = vrot.slane %v399, 7
        %v562 = vrot.slane %v402, 7
        %v563 = vrot.slane %v405, 7
        %v564 = vrot.slane %v385, 7
        %v565 = vrot.slane %v388, 7
        %v566 = vrot.slane %v391, 7
        %v567 = vrot.slane %v394, 7
        %v568 = vrot.slane %v397, 7
        %v569 = vrot.slane %v400, 7
        %v570 = vrot.slane %v403, 7
        %v571 = vrot.slane %v406, 7
        %v572 = vrot.slane %v386, 7
        %v573 = vrot.slane %v389, 7
        %v574 = vrot.slane %v392, 7
        %v575 = vrot.slane %v395, 7
        %v576 = vrot.slane %v398, 7
        %v577 = vrot.slane %v401, 7
        %v578 = vrot.slane %v404, 7
        %v579 = vrot.slane %v407, 7
        %vm580 = vcmp.lt.s32.totalorder %v433, 1
        %v581 = vsel %vm580, %v556, %v564
        %v582 = vsel %vm580, %v557, %v565
        %v583 = vsel %vm580, %v558, %v566
        %v584 = vsel %vm580, %v559, %v567
        %v585 = vsel %vm580, %v560, %v568
        %v586 = vsel %vm580, %v561, %v569
        %v587 = vsel %vm580, %v562, %v570
        %v588 = vsel %vm580, %v563, %v571
        %v589 = vsel %vm580, %v572, %v556
        %v590 = vsel %vm580, %v573, %v557
        %v591 = vsel %vm580, %v574, %v558
        %v592 = vsel %vm580, %v575, %v559
        %v593 = vsel %vm580, %v576, %v560
        %v594 = vsel %vm580, %v577, %v561
        %v595 = vsel %vm580, %v578, %v562
        %v596 = vsel %vm580, %v579, %v563
        %v597 = vld [vmem:[%s2 + $0x1] sm:$0x1]
        %v598 = vlaneseq
        %v599 = vshrl.u32 %v598, 7
        %v600 = vsub.s32 0, %v599
        %v601 = vrot.slane %v597, %v600
        %v602 = vmul.f32 %v589, %v601
        %v603 = vmul.f32 %v581, %v601
        %v604 = vmul.f32 %v590, %v601
        %v605 = vmul.f32 %v582, %v601
        %v606 = vmul.f32 %v591, %v601
        %v607 = vmul.f32 %v583, %v601
        %v608 = vmul.f32 %v592, %v601
        %v609 = vmul.f32 %v584, %v601
        %v610 = vadd.f32 %v548, %v602
        %v611 = vadd.f32 %v549, %v603
        %v612 = vadd.f32 %v550, %v604
        %v613 = vadd.f32 %v551, %v605
        %v614 = vadd.f32 %v552, %v606
        %v615 = vadd.f32 %v553, %v607
        %v616 = vadd.f32 %v554, %v608
        %v617 = vadd.f32 %v555, %v609
        %v618 = vld [vmem:[%s2 + $0x6] sm:$0x1]
        %v619 = vlaneseq
        %v620 = vshrl.u32 %v619, 7
        %v621 = vsub.s32 0, %v620
        %v622 = vrot.slane %v618, %v621
        %v623 = vmul.f32 %v590, %v622
        %v624 = vmul.f32 %v582, %v622
        %v625 = vmul.f32 %v591, %v622
        %v626 = vmul.f32 %v583, %v622
        %v627 = vmul.f32 %v592, %v622
        %v628 = vmul.f32 %v584, %v622
        %v629 = vmul.f32 %v593, %v622
        %v630 = vmul.f32 %v585, %v622
        %v631 = vadd.f32 %v610, %v623
        %v632 = vadd.f32 %v611, %v624
        %v633 = vadd.f32 %v612, %v625
        %v634 = vadd.f32 %v613, %v626
        %v635 = vadd.f32 %v614, %v627
        %v636 = vadd.f32 %v615, %v628
        %v637 = vadd.f32 %v616, %v629
        %v638 = vadd.f32 %v617, %v630
        %v639 = vld [vmem:[%s2 + $0xb] sm:$0x1]
        %v640 = vlaneseq
        %v641 = vshrl.u32 %v640, 7
        %v642 = vsub.s32 0, %v641
        %v643 = vrot.slane %v639, %v642
        %v644 = vmul.f32 %v591, %v643
        %v645 = vmul.f32 %v583, %v643
        %v646 = vmul.f32 %v592, %v643
        %v647 = vmul.f32 %v584, %v643
        %v648 = vmul.f32 %v593, %v643
        %v649 = vmul.f32 %v585, %v643
        %v650 = vmul.f32 %v594, %v643
        %v651 = vmul.f32 %v586, %v643
        %v652 = vadd.f32 %v631, %v644
        %v653 = vadd.f32 %v632, %v645
        %v654 = vadd.f32 %v633, %v646
        %v655 = vadd.f32 %v634, %v647
        %v656 = vadd.f32 %v635, %v648
        %v657 = vadd.f32 %v636, %v649
        %v658 = vadd.f32 %v637, %v650
        %v659 = vadd.f32 %v638, %v651
        %v660 = vld [vmem:[%s2 + $0x10] sm:$0x1]
        %v661 = vlaneseq
        %v662 = vshrl.u32 %v661, 7
        %v663 = vsub.s32 0, %v662
        %v664 = vrot.slane %v660, %v663
        %v665 = vmul.f32 %v592, %v664
        %v666 = vmul.f32 %v584, %v664
        %v667 = vmul.f32 %v593, %v664
        %v668 = vmul.f32 %v585, %v664
        %v669 = vmul.f32 %v594, %v664
        %v670 = vmul.f32 %v586, %v664
        %v671 = vmul.f32 %v595, %v664
        %v672 = vmul.f32 %v587, %v664
        %v673 = vadd.f32 %v652, %v665
        %v674 = vadd.f32 %v653, %v666
        %v675 = vadd.f32 %v654, %v667
        %v676 = vadd.f32 %v655, %v668
        %v677 = vadd.f32 %v656, %v669
        %v678 = vadd.f32 %v657, %v670
        %v679 = vadd.f32 %v658, %v671
        %v680 = vadd.f32 %v659, %v672
        %v681 = vld [vmem:[%s2 + $0x15] sm:$0x1]
        %v682 = vlaneseq
        %v683 = vshrl.u32 %v682, 7
        %v684 = vsub.s32 0, %v683
        %v685 = vrot.slane %v681, %v684
        %v686 = vmul.f32 %v593, %v685
        %v687 = vmul.f32 %v585, %v685
        %v688 = vmul.f32 %v594, %v685
        %v689 = vmul.f32 %v586, %v685
        %v690 = vmul.f32 %v595, %v685
        %v691 = vmul.f32 %v587, %v685
        %v692 = vmul.f32 %v596, %v685
        %v693 = vmul.f32 %v588, %v685
        %v694 = vadd.f32 %v673, %v686
        %v695 = vadd.f32 %v674, %v687
        %v696 = vadd.f32 %v675, %v688
        %v697 = vadd.f32 %v676, %v689
        %v698 = vadd.f32 %v677, %v690
        %v699 = vadd.f32 %v678, %v691
        %v700 = vadd.f32 %v679, %v692
        %v701 = vadd.f32 %v680, %v693
        %v702 = vld [vmem:[%s2 + $0x2] sm:$0x1]
        %v703 = vlaneseq
        %v704 = vshrl.u32 %v703, 7
        %v705 = vsub.s32 0, %v704
        %v706 = vrot.slane %v702, %v705
        %v707 = vmul.f32 %v384, %v706
        %v708 = vmul.f32 %v385, %v706
        %v709 = vmul.f32 %v387, %v706
        %v710 = vmul.f32 %v388, %v706
        %v711 = vmul.f32 %v390, %v706
        %v712 = vmul.f32 %v391, %v706
        %v713 = vmul.f32 %v393, %v706
        %v714 = vmul.f32 %v394, %v706
        %v715 = vadd.f32 %v694, %v707
        %v716 = vadd.f32 %v695, %v708
        %v717 = vadd.f32 %v696, %v709
        %v718 = vadd.f32 %v697, %v710
        %v719 = vadd.f32 %v698, %v711
        %v720 = vadd.f32 %v699, %v712
        %v721 = vadd.f32 %v700, %v713
        %v722 = vadd.f32 %v701, %v714
        %v723 = vld [vmem:[%s2 + $0x7] sm:$0x1]
        %v724 = vlaneseq
        %v725 = vshrl.u32 %v724, 7
        %v726 = vsub.s32 0, %v725
        %v727 = vrot.slane %v723, %v726
        %v728 = vmul.f32 %v387, %v727
        %v729 = vmul.f32 %v388, %v727
        %v730 = vmul.f32 %v390, %v727
        %v731 = vmul.f32 %v391, %v727
        %v732 = vmul.f32 %v393, %v727
        %v733 = vmul.f32 %v394, %v727
        %v734 = vmul.f32 %v396, %v727
        %v735 = vmul.f32 %v397, %v727
        %v736 = vadd.f32 %v715, %v728
        %v737 = vadd.f32 %v716, %v729
        %v738 = vadd.f32 %v717, %v730
        %v739 = vadd.f32 %v718, %v731
        %v740 = vadd.f32 %v719, %v732
        %v741 = vadd.f32 %v720, %v733
        %v742 = vadd.f32 %v721, %v734
        %v743 = vadd.f32 %v722, %v735
        %v744 = vld [vmem:[%s2 + $0xc] sm:$0x1]
        %v745 = vlaneseq
        %v746 = vshrl.u32 %v745, 7
        %v747 = vsub.s32 0, %v746
        %v748 = vrot.slane %v744, %v747
        %v749 = vmul.f32 %v390, %v748
        %v750 = vmul.f32 %v391, %v748
        %v751 = vmul.f32 %v393, %v748
        %v752 = vmul.f32 %v394, %v748
        %v753 = vmul.f32 %v396, %v748
        %v754 = vmul.f32 %v397, %v748
        %v755 = vmul.f32 %v399, %v748
        %v756 = vmul.f32 %v400, %v748
        %v757 = vadd.f32 %v736, %v749
        %v758 = vadd.f32 %v737, %v750
        %v759 = vadd.f32 %v738, %v751
        %v760 = vadd.f32 %v739, %v752
        %v761 = vadd.f32 %v740, %v753
        %v762 = vadd.f32 %v741, %v754
        %v763 = vadd.f32 %v742, %v755
        %v764 = vadd.f32 %v743, %v756
        %v765 = vld [vmem:[%s2 + $0x11] sm:$0x1]
        %v766 = vlaneseq
        %v767 = vshrl.u32 %v766, 7
        %v768 = vsub.s32 0, %v767
        %v769 = vrot.slane %v765, %v768
        %v770 = vmul.f32 %v393, %v769
        %v771 = vmul.f32 %v394, %v769
        %v772 = vmul.f32 %v396, %v769
        %v773 = vmul.f32 %v397, %v769
        %v774 = vmul.f32 %v399, %v769
        %v775 = vmul.f32 %v400, %v769
        %v776 = vmul.f32 %v402, %v769
        %v777 = vmul.f32 %v403, %v769
        %v778 = vadd.f32 %v757, %v770
        %v779 = vadd.f32 %v758, %v771
        %v780 = vadd.f32 %v759, %v772
        %v781 = vadd.f32 %v760, %v773
        %v782 = vadd.f32 %v761, %v774
        %v783 = vadd.f32 %v762, %v775
        %v784 = vadd.f32 %v763, %v776
        %v785 = vadd.f32 %v764, %v777
        %v786 = vld [vmem:[%s2 + $0x16] sm:$0x1]
        %v787 = vlaneseq
        %v788 = vshrl.u32 %v787, 7
        %v789 = vsub.s32 0, %v788
        %v790 = vrot.slane %v786, %v789
        %v791 = vmul.f32 %v396, %v790
        %v792 = vmul.f32 %v397, %v790
        %v793 = vmul.f32 %v399, %v790
        %v794 = vmul.f32 %v400, %v790
        %v795 = vmul.f32 %v402, %v790
        %v796 = vmul.f32 %v403, %v790
        %v797 = vmul.f32 %v405, %v790
        %v798 = vmul.f32 %v406, %v790
        %v799 = vadd.f32 %v778, %v791
        %v800 = vadd.f32 %v779, %v792
        %v801 = vadd.f32 %v780, %v793
        %v802 = vadd.f32 %v781, %v794
        %v803 = vadd.f32 %v782, %v795
        %v804 = vadd.f32 %v783, %v796
        %v805 = vadd.f32 %v784, %v797
        %v806 = vadd.f32 %v785, %v798
        %v807 = vrot.slane %v384, 1
        %v808 = vrot.slane %v387, 1
        %v809 = vrot.slane %v390, 1
        %v810 = vrot.slane %v393, 1
        %v811 = vrot.slane %v396, 1
        %v812 = vrot.slane %v399, 1
        %v813 = vrot.slane %v402, 1
        %v814 = vrot.slane %v405, 1
        %v815 = vrot.slane %v385, 1
        %v816 = vrot.slane %v388, 1
        %v817 = vrot.slane %v391, 1
        %v818 = vrot.slane %v394, 1
        %v819 = vrot.slane %v397, 1
        %v820 = vrot.slane %v400, 1
        %v821 = vrot.slane %v403, 1
        %v822 = vrot.slane %v406, 1
        %v823 = vrot.slane %v386, 1
        %v824 = vrot.slane %v389, 1
        %v825 = vrot.slane %v392, 1
        %v826 = vrot.slane %v395, 1
        %v827 = vrot.slane %v398, 1
        %v828 = vrot.slane %v401, 1
        %v829 = vrot.slane %v404, 1
        %v830 = vrot.slane %v407, 1
        %vm831 = vcmp.lt.s32.totalorder %v433, 7
        %v832 = vsel %vm831, %v815, %v823
        %v833 = vsel %vm831, %v816, %v824
        %v834 = vsel %vm831, %v817, %v825
        %v835 = vsel %vm831, %v818, %v826
        %v836 = vsel %vm831, %v819, %v827
        %v837 = vsel %vm831, %v820, %v828
        %v838 = vsel %vm831, %v821, %v829
        %v839 = vsel %vm831, %v822, %v830
        %v840 = vsel %vm831, %v807, %v815
        %v841 = vsel %vm831, %v808, %v816
        %v842 = vsel %vm831, %v809, %v817
        %v843 = vsel %vm831, %v810, %v818
        %v844 = vsel %vm831, %v811, %v819
        %v845 = vsel %vm831, %v812, %v820
        %v846 = vsel %vm831, %v813, %v821
        %v847 = vsel %vm831, %v814, %v822
        %v848 = vld [vmem:[%s2 + $0x3] sm:$0x1]
        %v849 = vlaneseq
        %v850 = vshrl.u32 %v849, 7
        %v851 = vsub.s32 0, %v850
        %v852 = vrot.slane %v848, %v851
        %v853 = vmul.f32 %v840, %v852
        %v854 = vmul.f32 %v832, %v852
        %v855 = vmul.f32 %v841, %v852
        %v856 = vmul.f32 %v833, %v852
        %v857 = vmul.f32 %v842, %v852
        %v858 = vmul.f32 %v834, %v852
        %v859 = vmul.f32 %v843, %v852
        %v860 = vmul.f32 %v835, %v852
        %v861 = vadd.f32 %v799, %v853
        %v862 = vadd.f32 %v800, %v854
        %v863 = vadd.f32 %v801, %v855
        %v864 = vadd.f32 %v802, %v856
        %v865 = vadd.f32 %v803, %v857
        %v866 = vadd.f32 %v804, %v858
        %v867 = vadd.f32 %v805, %v859
        %v868 = vadd.f32 %v806, %v860
        %v869 = vld [vmem:[%s2 + $0x8] sm:$0x1]
        %v870 = vlaneseq
        %v871 = vshrl.u32 %v870, 7
        %v872 = vsub.s32 0, %v871
        %v873 = vrot.slane %v869, %v872
        %v874 = vmul.f32 %v841, %v873
        %v875 = vmul.f32 %v833, %v873
        %v876 = vmul.f32 %v842, %v873
        %v877 = vmul.f32 %v834, %v873
        %v878 = vmul.f32 %v843, %v873
        %v879 = vmul.f32 %v835, %v873
        %v880 = vmul.f32 %v844, %v873
        %v881 = vmul.f32 %v836, %v873
        %v882 = vadd.f32 %v861, %v874
        %v883 = vadd.f32 %v862, %v875
        %v884 = vadd.f32 %v863, %v876
        %v885 = vadd.f32 %v864, %v877
        %v886 = vadd.f32 %v865, %v878
        %v887 = vadd.f32 %v866, %v879
        %v888 = vadd.f32 %v867, %v880
        %v889 = vadd.f32 %v868, %v881
        %v890 = vld [vmem:[%s2 + $0xd] sm:$0x1]
        %v891 = vlaneseq
        %v892 = vshrl.u32 %v891, 7
        %v893 = vsub.s32 0, %v892
        %v894 = vrot.slane %v890, %v893
        %v895 = vmul.f32 %v842, %v894
        %v896 = vmul.f32 %v834, %v894
        %v897 = vmul.f32 %v843, %v894
        %v898 = vmul.f32 %v835, %v894
        %v899 = vmul.f32 %v844, %v894
        %v900 = vmul.f32 %v836, %v894
        %v901 = vmul.f32 %v845, %v894
        %v902 = vmul.f32 %v837, %v894
        %v903 = vadd.f32 %v882, %v895
        %v904 = vadd.f32 %v883, %v896
        %v905 = vadd.f32 %v884, %v897
        %v906 = vadd.f32 %v885, %v898
        %v907 = vadd.f32 %v886, %v899
        %v908 = vadd.f32 %v887, %v900
        %v909 = vadd.f32 %v888, %v901
        %v910 = vadd.f32 %v889, %v902
        %v911 = vld [vmem:[%s2 + $0x12] sm:$0x1]
        %v912 = vlaneseq
        %v913 = vshrl.u32 %v912, 7
        %v914 = vsub.s32 0, %v913
        %v915 = vrot.slane %v911, %v914
        %v916 = vmul.f32 %v843, %v915
        %v917 = vmul.f32 %v835, %v915
        %v918 = vmul.f32 %v844, %v915
        %v919 = vmul.f32 %v836, %v915
        %v920 = vmul.f32 %v845, %v915
        %v921 = vmul.f32 %v837, %v915
        %v922 = vmul.f32 %v846, %v915
        %v923 = vmul.f32 %v838, %v915
        %v924 = vadd.f32 %v903, %v916
        %v925 = vadd.f32 %v904, %v917
        %v926 = vadd.f32 %v905, %v918
        %v927 = vadd.f32 %v906, %v919
        %v928 = vadd.f32 %v907, %v920
        %v929 = vadd.f32 %v908, %v921
        %v930 = vadd.f32 %v909, %v922
        %v931 = vadd.f32 %v910, %v923
        %v932 = vld [vmem:[%s2 + $0x17] sm:$0x1]
        %v933 = vlaneseq
        %v934 = vshrl.u32 %v933, 7
        %v935 = vsub.s32 0, %v934
        %v936 = vrot.slane %v932, %v935
        %v937 = vmul.f32 %v844, %v936
        %v938 = vmul.f32 %v836, %v936
        %v939 = vmul.f32 %v845, %v936
        %v940 = vmul.f32 %v837, %v936
        %v941 = vmul.f32 %v846, %v936
        %v942 = vmul.f32 %v838, %v936
        %v943 = vmul.f32 %v847, %v936
        %v944 = vmul.f32 %v839, %v936
        %v945 = vadd.f32 %v924, %v937
        %v946 = vadd.f32 %v925, %v938
        %v947 = vadd.f32 %v926, %v939
        %v948 = vadd.f32 %v927, %v940
        %v949 = vadd.f32 %v928, %v941
        %v950 = vadd.f32 %v929, %v942
        %v951 = vadd.f32 %v930, %v943
        %v952 = vadd.f32 %v931, %v944
        %v953 = vrot.slane %v384, 2
        %v954 = vrot.slane %v387, 2
        %v955 = vrot.slane %v390, 2
        %v956 = vrot.slane %v393, 2
        %v957 = vrot.slane %v396, 2
        %v958 = vrot.slane %v399, 2
        %v959 = vrot.slane %v402, 2
        %v960 = vrot.slane %v405, 2
        %v961 = vrot.slane %v385, 2
        %v962 = vrot.slane %v388, 2
        %v963 = vrot.slane %v391, 2
        %v964 = vrot.slane %v394, 2
        %v965 = vrot.slane %v397, 2
        %v966 = vrot.slane %v400, 2
        %v967 = vrot.slane %v403, 2
        %v968 = vrot.slane %v406, 2
        %v969 = vrot.slane %v386, 2
        %v970 = vrot.slane %v389, 2
        %v971 = vrot.slane %v392, 2
        %v972 = vrot.slane %v395, 2
        %v973 = vrot.slane %v398, 2
        %v974 = vrot.slane %v401, 2
        %v975 = vrot.slane %v404, 2
        %v976 = vrot.slane %v407, 2
        %vm977 = vcmp.lt.s32.totalorder %v433, 6
        %v978 = vsel %vm977, %v961, %v969
        %v979 = vsel %vm977, %v962, %v970
        %v980 = vsel %vm977, %v963, %v971
        %v981 = vsel %vm977, %v964, %v972
        %v982 = vsel %vm977, %v965, %v973
        %v983 = vsel %vm977, %v966, %v974
        %v984 = vsel %vm977, %v967, %v975
        %v985 = vsel %vm977, %v968, %v976
        %v986 = vsel %vm977, %v953, %v961
        %v987 = vsel %vm977, %v954, %v962
        %v988 = vsel %vm977, %v955, %v963
        %v989 = vsel %vm977, %v956, %v964
        %v990 = vsel %vm977, %v957, %v965
        %v991 = vsel %vm977, %v958, %v966
        %v992 = vsel %vm977, %v959, %v967
        %v993 = vsel %vm977, %v960, %v968
        %v994 = vld [vmem:[%s2 + $0x4] sm:$0x1]
        %v995 = vlaneseq
        %v996 = vshrl.u32 %v995, 7
        %v997 = vsub.s32 0, %v996
        %v998 = vrot.slane %v994, %v997
        %v999 = vmul.f32 %v986, %v998
        %v1000 = vmul.f32 %v978, %v998
        %v1001 = vmul.f32 %v987, %v998
        %v1002 = vmul.f32 %v979, %v998
        %v1003 = vmul.f32 %v988, %v998
        %v1004 = vmul.f32 %v980, %v998
        %v1005 = vmul.f32 %v989, %v998
        %v1006 = vmul.f32 %v981, %v998
        %v1007 = vadd.f32 %v945, %v999
        %v1008 = vadd.f32 %v946, %v1000
        %v1009 = vadd.f32 %v947, %v1001
        %v1010 = vadd.f32 %v948, %v1002
        %v1011 = vadd.f32 %v949, %v1003
        %v1012 = vadd.f32 %v950, %v1004
        %v1013 = vadd.f32 %v951, %v1005
        %v1014 = vadd.f32 %v952, %v1006
        %v1015 = vld [vmem:[%s2 + $0x9] sm:$0x1]
        %v1016 = vlaneseq
        %v1017 = vshrl.u32 %v1016, 7
        %v1018 = vsub.s32 0, %v1017
        %v1019 = vrot.slane %v1015, %v1018
        %v1020 = vmul.f32 %v987, %v1019
        %v1021 = vmul.f32 %v979, %v1019
        %v1022 = vmul.f32 %v988, %v1019
        %v1023 = vmul.f32 %v980, %v1019
        %v1024 = vmul.f32 %v989, %v1019
        %v1025 = vmul.f32 %v981, %v1019
        %v1026 = vmul.f32 %v990, %v1019
        %v1027 = vmul.f32 %v982, %v1019
        %v1028 = vadd.f32 %v1007, %v1020
        %v1029 = vadd.f32 %v1008, %v1021
        %v1030 = vadd.f32 %v1009, %v1022
        %v1031 = vadd.f32 %v1010, %v1023
        %v1032 = vadd.f32 %v1011, %v1024
        %v1033 = vadd.f32 %v1012, %v1025
        %v1034 = vadd.f32 %v1013, %v1026
        %v1035 = vadd.f32 %v1014, %v1027
        %v1036 = vld [vmem:[%s2 + $0xe] sm:$0x1]
        %v1037 = vlaneseq
        %v1038 = vshrl.u32 %v1037, 7
        %v1039 = vsub.s32 0, %v1038
        %v1040 = vrot.slane %v1036, %v1039
        %v1041 = vmul.f32 %v988, %v1040
        %v1042 = vmul.f32 %v980, %v1040
        %v1043 = vmul.f32 %v989, %v1040
        %v1044 = vmul.f32 %v981, %v1040
        %v1045 = vmul.f32 %v990, %v1040
        %v1046 = vmul.f32 %v982, %v1040
        %v1047 = vmul.f32 %v991, %v1040
        %v1048 = vmul.f32 %v983, %v1040
        %v1049 = vadd.f32 %v1028, %v1041
        %v1050 = vadd.f32 %v1029, %v1042
        %v1051 = vadd.f32 %v1030, %v1043
        %v1052 = vadd.f32 %v1031, %v1044
        %v1053 = vadd.f32 %v1032, %v1045
        %v1054 = vadd.f32 %v1033, %v1046
        %v1055 = vadd.f32 %v1034, %v1047
        %v1056 = vadd.f32 %v1035, %v1048
        %v1057 = vld [vmem:[%s2 + $0x13] sm:$0x1]
        %v1058 = vlaneseq
        %v1059 = vshrl.u32 %v1058, 7
        %v1060 = vsub.s32 0, %v1059
        %v1061 = vrot.slane %v1057, %v1060
        %v1062 = vmul.f32 %v989, %v1061
        %v1063 = vmul.f32 %v981, %v1061
        %v1064 = vmul.f32 %v990, %v1061
        %v1065 = vmul.f32 %v982, %v1061
        %v1066 = vmul.f32 %v991, %v1061
        %v1067 = vmul.f32 %v983, %v1061
        %v1068 = vmul.f32 %v992, %v1061
        %v1069 = vmul.f32 %v984, %v1061
        %v1070 = vadd.f32 %v1049, %v1062
        %v1071 = vadd.f32 %v1050, %v1063
        %v1072 = vadd.f32 %v1051, %v1064
        %v1073 = vadd.f32 %v1052, %v1065
        %v1074 = vadd.f32 %v1053, %v1066
        %v1075 = vadd.f32 %v1054, %v1067
        %v1076 = vadd.f32 %v1055, %v1068
        %v1077 = vadd.f32 %v1056, %v1069
        %v1078 = vld [vmem:[%s2 + $0x18] sm:$0x1]
        %v1079 = vlaneseq
        %v1080 = vshrl.u32 %v1079, 7
        %v1081 = vsub.s32 0, %v1080
        %v1082 = vrot.slane %v1078, %v1081
        %v1083 = vmul.f32 %v990, %v1082
        %v1084 = vmul.f32 %v982, %v1082
        %v1085 = vmul.f32 %v991, %v1082
        %v1086 = vmul.f32 %v983, %v1082
        %v1087 = vmul.f32 %v992, %v1082
        %v1088 = vmul.f32 %v984, %v1082
        %v1089 = vmul.f32 %v993, %v1082
        %v1090 = vmul.f32 %v985, %v1082
        %v1091 = vadd.f32 %v1070, %v1083
        %v1092 = vadd.f32 %v1071, %v1084
        %v1093 = vadd.f32 %v1072, %v1085
        %v1094 = vadd.f32 %v1073, %v1086
        %v1095 = vadd.f32 %v1074, %v1087
        %v1096 = vadd.f32 %v1075, %v1088
        %v1097 = vadd.f32 %v1076, %v1089
        %v1098 = vadd.f32 %v1077, %v1090
        %v1099 = vld [vmem:[%s274] sm:$0xff]
        %v1100 = vld [vmem:[%s274 + $0x8] sm:$0xff]
        %v1101 = vld [vmem:[%s274 + $0x10] sm:$0xff]
        %v1102 = vld [vmem:[%s274 + $0x18] sm:$0xff]
        %v1103 = vld [vmem:[%s274 + $0x20] sm:$0xff]
        %v1104 = vld [vmem:[%s274 + $0x28] sm:$0xff]
        %v1105 = vld [vmem:[%s274 + $0x30] sm:$0xff]
        %v1106 = vld [vmem:[%s274 + $0x38] sm:$0xff]
        %1108 = vset.pattern.permute.xlu0 0
        %1109 = vperm.xlu0 %1108, %v1099
        %v1110 = vpop.permute.xlu0 %1109
        %1113 = vset.pattern.permute.xlu0 0
        %1114 = vperm.xlu0 %1113, %v1100
        %v1115 = vpop.permute.xlu0 %1114
        %1118 = vset.pattern.permute.xlu0 0
        %1119 = vperm.xlu0 %1118, %v1101
        %v1120 = vpop.permute.xlu0 %1119
        %1123 = vset.pattern.permute.xlu0 0
        %1124 = vperm.xlu0 %1123, %v1102
        %v1125 = vpop.permute.xlu0 %1124
        %1128 = vset.pattern.permute.xlu0 0
        %1129 = vperm.xlu0 %1128, %v1103
        %v1130 = vpop.permute.xlu0 %1129
        %1133 = vset.pattern.permute.xlu0 0
        %1134 = vperm.xlu0 %1133, %v1104
        %v1135 = vpop.permute.xlu0 %1134
        %1138 = vset.pattern.permute.xlu0 0
        %1139 = vperm.xlu0 %1138, %v1105
        %v1140 = vpop.permute.xlu0 %1139
        %1143 = vset.pattern.permute.xlu0 0
        %1144 = vperm.xlu0 %1143, %v1106
        %v1145 = vpop.permute.xlu0 %1144
        %v1147 = vld [vmem:[%s3] sm:$0x1]
        %v1149 = vlaneseq
        %v1150 = vshrl.u32 %v1149, 7
        %v1151 = vsub.s32 0, %v1150
        %v1152 = vrot.slane %v1147, %v1151
        %v1154 = vadd.f32 %v1091, %v1152
        %v1155 = vadd.f32 %v1092, %v1152
        %v1156 = vadd.f32 %v1093, %v1152
        %v1157 = vadd.f32 %v1094, %v1152
        %v1158 = vadd.f32 %v1095, %v1152
        %v1159 = vadd.f32 %v1096, %v1152
        %v1160 = vadd.f32 %v1097, %v1152
        %v1161 = vadd.f32 %v1098, %v1152
        %v1162 = vmul.f32 %v1154, %v1110
        %v1163 = vmul.f32 %v1155, %v1115
        %v1164 = vmul.f32 %v1156, %v1120
        %v1165 = vmul.f32 %v1157, %v1125
        %v1166 = vmul.f32 %v1158, %v1130
        %v1167 = vmul.f32 %v1159, %v1135
        %v1168 = vmul.f32 %v1160, %v1140
        %v1169 = vmul.f32 %v1161, %v1145
        %v1170 = vld [vmem:[%s4] sm:$0x1]
        %v1172 = vlaneseq
        %v1173 = vshrl.u32 %v1172, 7
        %v1174 = vsub.s32 0, %v1173
        %v1175 = vrot.slane %v1170, %v1174
        %v1177 = vadd.f32 %v1162, %v1175
        %v1178 = vadd.f32 %v1163, %v1175
        %v1179 = vadd.f32 %v1164, %v1175
        %v1180 = vadd.f32 %v1165, %v1175
        %v1181 = vadd.f32 %v1166, %v1175
        %v1182 = vadd.f32 %v1167, %v1175
        %v1183 = vadd.f32 %v1168, %v1175
        %v1184 = vadd.f32 %v1169, %v1175
        %v1185 = vmul.f32 %v1177, %v1110
        %v1186 = vmul.f32 %v1178, %v1115
        %v1187 = vmul.f32 %v1179, %v1120
        %v1188 = vmul.f32 %v1180, %v1125
        %v1189 = vmul.f32 %v1181, %v1130
        %v1190 = vmul.f32 %v1182, %v1135
        %v1191 = vmul.f32 %v1183, %v1140
        %v1192 = vmul.f32 %v1184, %v1145
        %v1193 = vmax.f32 %v1185, 0.0
        %v1194 = vmax.f32 %v1186, 0.0
        %v1195 = vmax.f32 %v1187, 0.0
        %v1196 = vmax.f32 %v1188, 0.0
        %v1197 = vmax.f32 %v1189, 0.0
        %v1198 = vmax.f32 %v1190, 0.0
        %v1199 = vmax.f32 %v1191, 0.0
        %v1200 = vmax.f32 %v1192, 0.0
        %1201 = vst [vmem:[%s259] sm:$0xff] %v1193
        %1202 = vst [vmem:[%s259 + $0x8] sm:$0xff] %v1194
        %1203 = vst [vmem:[%s259 + $0x10] sm:$0xff] %v1195
        %1204 = vst [vmem:[%s259 + $0x18] sm:$0xff] %v1196
        %1205 = vst [vmem:[%s259 + $0x20] sm:$0xff] %v1197
        %1206 = vst [vmem:[%s259 + $0x28] sm:$0xff] %v1198
        %1207 = vst [vmem:[%s259 + $0x30] sm:$0xff] %v1199
        %1208 = vst [vmem:[%s259 + $0x38] sm:$0xff] %v1200
        %s1209 = sand.u32 %s158, 1
        %s1210 = scalar_lea.sflag [#allocation4], %s1209
        %s1211 = sand.u32 %s158, 1
        %s1212 = smul.addr %s1211, 64
        %s1213 = scalar_lea.vmem [#allocation3], %s1212
        // Predicated region
        $region45: #{tpu_custom_call.1} parent=39 // pred_check
          %p1214 = pneg %p168
        $region46: #{tpu_custom_call.1} parent=39 // pred_check_branch
          %1216 = sbr.rel (%p1214) target = $region48
        $region47: #{tpu_custom_call.1} parent=39 // pred_region
          %s1217 = smul.u32 4, %s24
          %s1219 = ssub.s32 1024, 1024
          %1220 = vsyncadd %s1210, %s1219
          %s1221 = smul.addr %s1217, 2
          %s1222 = smul.addr %s23, 32
          %s1223 = sadd.s32 %s1221, %s1222
          %s1224 = smul.addr %s1223, 128
          %s1225 = scalar_lea.hbm %s5, %s1224
          %s1226 = sshll.u32 %s1213, 4
          %s1227 = int_to_ptr.vmem [resolvable:$true] %s1226
          %1232 = dma.vmem_to_hbm [thread:$0]  %s1227, 1024, %s1225, %s1210, 128, 128, 8
        $region48: #{tpu_custom_call.1} parent=39 // pred_fallthru
          _
      $region40: #{tpu_custom_call.1} parent=5 // pred_fallthru
        _
      %p1233 = scmp.le.s32.totalorder 2, %s14
      // Predicated region
      $region49: #{tpu_custom_call.1} parent=5 // pred_check
        %p1234 = pneg %p1233
      $region50: #{tpu_custom_call.1} parent=5 // pred_check_branch
        %1236 = sbr.rel (%p1234) target = $region52
      $region51: #{tpu_custom_call.1} parent=5 // pred_region
        %s1237 = ssub.s32 %s14, 2
        // Predicated region
        $region53: #{tpu_custom_call.1} parent=51 // pred_check
          %p1238 = pneg %p174
        $region54: #{tpu_custom_call.1} parent=51 // pred_check_branch
          %1240 = sbr.rel (%p1238) target = $region56
        $region55: #{tpu_custom_call.1} parent=51 // pred_region
          %s1241 = sand.u32 %s159, 1
          %s1242 = scalar_lea.sflag [#allocation4], %s1241
          %s1243 = sand.u32 %s159, 1
          %s1244 = smul.addr %s1243, 64
          %s1245 = scalar_lea.vmem [#allocation3], %s1244
          %1246 = dma.done %s1242, 1024
        $region56: #{tpu_custom_call.1} parent=51 // pred_fallthru
          _
      $region52: #{tpu_custom_call.1} parent=5 // pred_fallthru
        _
    $region6: #{tpu_custom_call.1} parent=1 // loop_footer
      %s18 = sadd.s32 1, %s14
    $region7: #{tpu_custom_call.1} parent=1 // loop_footer_branch
      %13 = sbr.rel target = $region3
    $region8: #{tpu_custom_call.1} parent=1 // loop_exit
      _
    %1247 = vsyncpa [#allocation4], 1
    %s1248 = scalar_lea.sflag [#allocation4], 1
    %1249 = vsyncpa %s1248, 1

</llo_original>
